<compile_context>
chip_gen: v7x
topology: tpu7x:2x2x1
jax: 0.10.0
libtpu: 0.0.40
codegen_flags: <defaults>
</compile_context>

<pallas_src>
import functools
import math

import jax
import jax.numpy as jnp
import numpy as np
from jax import lax
from jax.experimental import pallas as pl
from jax.experimental.pallas import tpu as pltpu


# -----------------------------------------------------------------------------
# SE(3) exponential map (parameter preprocessing, plain JAX "glue")
# -----------------------------------------------------------------------------
def se3_exp_map_jax(xi):
    """xi: [S, 6] -> (R: [S, 3, 3], t: [S, 3]).  Mirrors the PyTorch code."""
    omega = xi[:, :3]
    v = xi[:, 3:]
    theta = jnp.maximum(jnp.linalg.norm(omega, axis=1, keepdims=True), 1e-8)
    wn = omega / theta
    wx, wy, wz = wn[:, 0], wn[:, 1], wn[:, 2]
    zeros = jnp.zeros_like(wx)
    K = jnp.stack(
        [
            jnp.stack([zeros, -wz, wy], axis=-1),
            jnp.stack([wz, zeros, -wx], axis=-1),
            jnp.stack([-wy, wx, zeros], axis=-1),
        ],
        axis=-2,
    )  # [S, 3, 3]
    K2 = jnp.matmul(K, K)
    I = jnp.eye(3, dtype=xi.dtype)[None]
    th = theta[:, :, None]
    st = jnp.sin(th)
    ct = jnp.cos(th)
    R = I + st * K + (1.0 - ct) * K2
    V = I + ((1.0 - ct) / th**2) * K + ((th - st) / th**3) * K2
    t = jnp.matmul(V, v[:, :, None])[:, :, 0]
    return R, t


# -----------------------------------------------------------------------------
# Pallas kernel
# -----------------------------------------------------------------------------
def _lie_attn_kernel(
    xp_ref,    # [1, 3, S, G] f32   planar x: xp[0,k,s,g] = x_pad[b, s, 3g+k]
    rt_ref,    # [S, 12]      f32   rt[s,3j+k] = R[s,j,k]; rt[s,9+j] = t[s,j]
    wqkv_ref,  # [3, G, 3*Dh] bf16  per-plane fused QKV weights (Q pre-scaled)
    wo_ref,    # [Dh, Ho]     bf16  output projection (heads stacked on rows)
    out_ref,   # [1, tq, Ho]  f32
    attn_ref,  # [1, nH, tq, S] f32
    q_scr,     # [nH, S, hd_pad] bf16   (persist across the q-tile grid axis)
    k_scr,     # [nH, S, hd_pad] bf16
    v_scr,     # [nH, S, hd_pad] bf16
    *,
    num_heads,
    hd_pad,
    tq,
):
    S = k_scr.shape[1]
    Dh = num_heads * hd_pad
    qi = pl.program_id(1)

    # --- once per batch row: SE(3) rotation (pure VPU) + fused QKV matmul ----
    @pl.when(qi == 0)
    def _():
        rt = rt_ref[...]  # [S, 12] f32
        qkv = None
        for j in range(3):
            # plane_j[s, g] = t[s, j] + sum_k R[s, j, k] * x[s, 3g + k]
            plane = rt[:, 9 + j : 10 + j]  # (S, 1) translation
            for k in range(3):
                plane = plane + xp_ref[0, k] * rt[:, 3 * j + k : 3 * j + k + 1]
            part = jnp.dot(
                plane.astype(jnp.bfloat16),
                wqkv_ref[j],
                preferred_element_type=jnp.float32,
            )  # [S, 3*Dh]
            qkv = part if qkv is None else qkv + part

        # 128-lane-aligned column blocks -> per-head Q/K/V scratch (bf16).
        for h in range(num_heads):
            q_scr[h] = qkv[:, h * hd_pad : (h + 1) * hd_pad].astype(jnp.bfloat16)
            k_scr[h] = qkv[:, Dh + h * hd_pad : Dh + (h + 1) * hd_pad].astype(
                jnp.bfloat16
            )
            v_scr[h] = qkv[:, 2 * Dh + h * hd_pad : 2 * Dh + (h + 1) * hd_pad].astype(
                jnp.bfloat16
            )

    # --- per q-tile: causal scores, softmax, attention, output projection ----
    qs = pl.multiple_of(qi * tq, tq)
    q_t = q_scr[:, pl.ds(qs, tq), :]  # [nH, tq, hd_pad] bf16
    k_all = k_scr[...]                # [nH, S,  hd_pad] bf16

    scores = jnp.einsum(
        "hqd,hkd->hqk", q_t, k_all, preferred_element_type=jnp.float32
    )  # [nH, tq, S] f32 (1/sqrt(hd) is folded into the Q weights)

    row = qs + lax.broadcasted_iota(jnp.int32, (tq, S), 0)  # 2-D mask, bcast over heads
    col = lax.broadcasted_iota(jnp.int32, (tq, S), 1)
    scores = jnp.where((col > row)[None], -jnp.inf, scores)

    smax = jnp.max(scores, axis=-1, keepdims=True)
    e = jnp.exp(scores - smax)                       # f32 (v5e has no bf16 EUP)
    denom = jnp.sum(e, axis=-1, keepdims=True)
    w = e * pl.reciprocal(denom, approx=True)        # [nH, tq, S] f32

    attn_ref[0] = w  # f32 store, no wrapper recast

    # Per-head AV, contexts concatenated at 128-aligned lane offsets, then ONE
    # output-projection matmul with contraction depth nH*hd_pad (fused head sum).
    ctx = jnp.concatenate(
        [
            jnp.dot(
                w[h].astype(jnp.bfloat16),
                v_scr[h],
                preferred_element_type=jnp.float32,
            )
            for h in range(num_heads)
        ],
        axis=1,
    ).astype(jnp.bfloat16)  # [tq, Dh]

    out_ref[0] = jnp.dot(ctx, wo_ref[...], preferred_element_type=jnp.float32)


def _lie_attn_pallas(xplanes, rt, wqkv3, wo2, num_heads, hd_pad, tq, Ho):
    B, _, S, G = xplanes.shape
    Dh = num_heads * hd_pad
    nQ = S // tq

    kernel = functools.partial(
        _lie_attn_kernel, num_heads=num_heads, hd_pad=hd_pad, tq=tq
    )

    # Per-generation VMEM budget: ~75% of physical, capped at 100 MiB.
    try:
        cap = int(pltpu.get_tpu_info().vmem_capacity_bytes)
        vmem_limit = min((cap * 3) // 4, 100 * 1024 * 1024)
    except Exception:
        vmem_limit = 48 * 1024 * 1024

    out, attn = pl.pallas_call(
        kernel,
        out_shape=(
            jax.ShapeDtypeStruct((B, S, Ho), jnp.float32),
            jax.ShapeDtypeStruct((B, num_heads, S, S), jnp.float32),
        ),
        grid=(B, nQ),
        in_specs=[
            pl.BlockSpec((1, 3, S, G), lambda b, q: (b, 0, 0, 0)),
            pl.BlockSpec((S, 12), lambda b, q: (0, 0),
                         pipeline_mode=pl.Buffered(1)),
            pl.BlockSpec((3, G, 3 * Dh), lambda b, q: (0, 0, 0),
                         pipeline_mode=pl.Buffered(1)),
            pl.BlockSpec((Dh, Ho), lambda b, q: (0, 0),
                         pipeline_mode=pl.Buffered(1)),
        ],
        out_specs=(
            pl.BlockSpec((1, tq, Ho), lambda b, q: (b, q, 0)),
            pl.BlockSpec((1, num_heads, tq, S), lambda b, q: (b, 0, q, 0)),
        ),
        scratch_shapes=[
            pltpu.VMEM((num_heads, S, hd_pad), jnp.bfloat16),
            pltpu.VMEM((num_heads, S, hd_pad), jnp.bfloat16),
            pltpu.VMEM((num_heads, S, hd_pad), jnp.bfloat16),
        ],
        compiler_params=pltpu.CompilerParams(
            dimension_semantics=("parallel", "arbitrary"),
            vmem_limit_bytes=vmem_limit,
        ),
    )(xplanes, rt, wqkv3, wo2)
    return out, attn


# -----------------------------------------------------------------------------
# Wrapper: parameter / layout preprocessing (glue) + kernel call
# -----------------------------------------------------------------------------
def lie_rotation_attention_forward(x, rotation_params, Wq, Wk, Wv, Wo, num_heads):
    """Matches LieRotationAttention.forward(x) with attention_mask=None,
    position_ids=arange(S).  x: [B, S, H] -> (out [B,S,H], attn [B,nH,S,S])."""
    B, S, H = x.shape
    head_dim = H // num_heads
    pad3 = (3 - H % 3) % 3
    Hp = H + pad3
    G = Hp // 3
    hd_pad = ((head_dim + 127) // 128) * 128
    Dh = num_heads * hd_pad
    Ho = ((H + 127) // 128) * 128
    tq = 128 if S % 128 == 0 else S  # q-tile (flash-style) when S allows it

    # Per-position SE(3) transforms -> compact coefficient table [S, 12].
    R, t = se3_exp_map_jax(rotation_params[:S].astype(jnp.float32))
    rt = jnp.concatenate([R.reshape(S, 9), t], axis=1).astype(jnp.float32)

    # Planar x layout (same byte count as x): xplanes[b,k,s,g] = x_pad[b,s,3g+k]
    xp = jnp.pad(x, ((0, 0), (0, 0), (0, pad3)))
    xplanes = xp.reshape(B, S, G, 3).transpose(0, 3, 1, 2).astype(jnp.float32)

    # Fused QKV weight slab.  Rows are reordered to the planar layout the
    # kernel produces (plane j holds coordinate j of every triple); rows that
    # correspond to the Hp-padding are zero, reproducing rotated_x[..., :H].
    scale = 1.0 / math.sqrt(head_dim)

    def qkv_cols(W, s):
        WT = W.T.astype(jnp.float32) * s                       # [H_in, H_out]
        WT = jnp.pad(WT, ((0, pad3), (0, 0)))                  # [Hp, H]
        WT = WT.reshape(Hp, num_heads, head_dim)
        WT = jnp.pad(WT, ((0, 0), (0, 0), (0, hd_pad - head_dim)))
        return WT.reshape(Hp, Dh)                              # per-head 128-aligned

    Wall = jnp.concatenate(
        [qkv_cols(Wq, scale), qkv_cols(Wk, 1.0), qkv_cols(Wv, 1.0)], axis=1
    )  # [Hp, 3*Dh], original row order
    # Wqkv3[j, g, :] = Wall[3g + j, :]  (row block fed by rotation plane j)
    Wqkv3 = Wall.reshape(G, 3, 3 * Dh).transpose(1, 0, 2).astype(jnp.bfloat16)

    # Output projection: heads stacked along rows, columns lane-dense (Ho).
    WoT = jnp.pad(Wo.T.astype(jnp.float32), ((0, 0), (0, Ho - H)))      # [H, Ho]
    Wo2 = (
        jnp.pad(
            WoT.reshape(num_heads, head_dim, Ho),
            ((0, 0), (0, hd_pad - head_dim), (0, 0)),
        )
        .reshape(Dh, Ho)
        .astype(jnp.bfloat16)
    )

    out_p, attn = _lie_attn_pallas(
        xplanes, rt, Wqkv3, Wo2, num_heads, hd_pad, tq, Ho
    )
    return out_p[:, :, :H], attn


# -----------------------------------------------------------------------------
# Pure-JAX reference (same math as the PyTorch module) for verification
# -----------------------------------------------------------------------------
def reference_forward(x, rotation_params, Wq, Wk, Wv, Wo, num_heads):
    B, S, H = x.shape
    hd = H // num_heads
    pad = (3 - H % 3) % 3
    G = (H + pad) // 3
    R, t = se3_exp_map_jax(rotation_params[:S])
    xp = jnp.pad(x, ((0, 0), (0, 0), (0, pad)))
    x3 = xp.reshape(B, S, G, 3)
    xr3 = jnp.einsum("sjk,bsgk->bsgj", R, x3) + t[None, :, None, :]
    xr = xr3.reshape(B, S, -1)[:, :, :H]
    q = (xr @ Wq.T).reshape(B, S, num_heads, hd).transpose(0, 2, 1, 3)
    k = (xr @ Wk.T).reshape(B, S, num_heads, hd).transpose(0, 2, 1, 3)
    v = (xr @ Wv.T).reshape(B, S, num_heads, hd).transpose(0, 2, 1, 3)
    scores = jnp.einsum("bhqd,bhkd->bhqk", q, k) / math.sqrt(hd)
    causal = jnp.triu(jnp.ones((S, S), dtype=bool), 1)
    scores = jnp.where(causal[None, None], -jnp.inf, scores)
    w = jax.nn.softmax(scores, axis=-1)
    ao = jnp.einsum("bhqk,bhkd->bhqd", w, v).transpose(0, 2, 1, 3).reshape(B, S, H)
    return ao @ Wo.T, w


# -----------------------------------------------------------------------------
if __name__ == "__main__":
    # Small shapes consistent with the module (hidden % 3 != 0 exercises the
    # padding / truncation path of apply_lie_rotation).
    B, S, H = 2, 8, 32
    num_heads = 4
    max_seq_len = 32

    key = jax.random.PRNGKey(0)
    kx, kr, kq, kk, kv, ko = jax.random.split(key, 6)

    x = jax.random.normal(kx, (B, S, H), dtype=jnp.float32)
    rotation_params = 0.02 * jax.random.normal(kr, (max_seq_len, 6), dtype=jnp.float32)
    a = math.sqrt(6.0 / (H + H))  # xavier_uniform bound
    Wq = jax.random.uniform(kq, (H, H), minval=-a, maxval=a, dtype=jnp.float32)
    Wk = jax.random.uniform(kk, (H, H), minval=-a, maxval=a, dtype=jnp.float32)
    Wv = jax.random.uniform(kv, (H, H), minval=-a, maxval=a, dtype=jnp.float32)
    Wo = jax.random.uniform(ko, (H, H), minval=-a, maxval=a, dtype=jnp.float32)

    out, attn = lie_rotation_attention_forward(
        x, rotation_params, Wq, Wk, Wv, Wo, num_heads
    )
    out = jax.block_until_ready(out)
    attn = jax.block_until_ready(attn)

    ref_out, ref_attn = reference_forward(
        x, rotation_params, Wq, Wk, Wv, Wo, num_heads
    )
    # bf16 MXU operands + approx reciprocal -> looser tolerances than pure f32.
    np.testing.assert_allclose(np.asarray(out), np.asarray(ref_out), rtol=2e-2, atol=2e-2)
    np.testing.assert_allclose(np.asarray(attn), np.asarray(ref_attn), rtol=2e-2, atol=2e-2)

    print("KERNEL_OK")
</pallas_src>

<mosaic_0001>
module attributes {stable_mosaic.version = 11 : i64} {
  func.func @_lie_attn_kernel(%arg0: i32, %arg1: i32, %arg2: memref<1x3x8x11xf32, #tpu.memory_space<vmem>>, %arg3: memref<8x12xf32, #tpu.memory_space<vmem>>, %arg4: memref<3x11x1536xbf16, #tpu.memory_space<vmem>>, %arg5: memref<512x128xbf16, #tpu.memory_space<vmem>>, %arg6: memref<1x8x128xf32, #tpu.memory_space<vmem>>, %arg7: memref<1x4x8x8xf32, #tpu.memory_space<vmem>>, %arg8: memref<4x8x128xbf16, #tpu.memory_space<vmem>>, %arg9: memref<4x8x128xbf16, #tpu.memory_space<vmem>>, %arg10: memref<4x8x128xbf16, #tpu.memory_space<vmem>>) attributes {dimension_semantics = [#tpu.dimension_semantics<parallel>, #tpu.dimension_semantics<arbitrary>], iteration_bounds = array<i64: 2, 1>, scalar_prefetch = 0 : i64, scratch_operands = 3 : i64, tpu.core_type = #tpu.core_type<tc>, window_params = [{transform_indices = @transform_0, window_bounds = array<i64: 1, 3, 8, 11>}, {pipeline_mode = #tpu.pipeline_mode<synchronous>, transform_indices = @transform_1, window_bounds = array<i64: 8, 12>}, {pipeline_mode = #tpu.pipeline_mode<synchronous>, transform_indices = @transform_2, window_bounds = array<i64: 3, 11, 1536>}, {pipeline_mode = #tpu.pipeline_mode<synchronous>, transform_indices = @transform_3, window_bounds = array<i64: 512, 128>}, {transform_indices = @transform_4, window_bounds = array<i64: 1, 8, 128>}, {transform_indices = @transform_5, window_bounds = array<i64: 1, 4, 8, 8>}]} {
    %c0_i32 = arith.constant 0 : i32
    %0 = arith.cmpi eq, %arg1, %c0_i32 : i32
    %1 = arith.extui %0 : i1 to i32
    %c0_i32_0 = arith.constant 0 : i32
    %2 = arith.cmpi ne, %1, %c0_i32_0 : i32
    scf.if %2 {
      %c0_31 = arith.constant 0 : index
      %c0_32 = arith.constant 0 : index
      %63 = vector.load %arg3[%c0_31, %c0_32] : memref<8x12xf32, #tpu.memory_space<vmem>>, vector<8x12xf32>
      %64 = vector.extract_strided_slice %63 {offsets = [0, 9], sizes = [8, 1], strides = [1, 1]} : vector<8x12xf32> to vector<8x1xf32>
      %c0_33 = arith.constant 0 : index
      %c0_34 = arith.constant 0 : index
      %c0_35 = arith.constant 0 : index
      %c0_36 = arith.constant 0 : index
      %65 = vector.load %arg2[%c0_33, %c0_34, %c0_35, %c0_36] : memref<1x3x8x11xf32, #tpu.memory_space<vmem>>, vector<1x1x8x11xf32>
      %66 = vector.shape_cast %65 : vector<1x1x8x11xf32> to vector<8x11xf32>
      %67 = vector.extract_strided_slice %63 {offsets = [0, 0], sizes = [8, 1], strides = [1, 1]} : vector<8x12xf32> to vector<8x1xf32>
      %68 = vector.broadcast %67 : vector<8x1xf32> to vector<8x11xf32>
      %69 = arith.mulf %66, %68 : vector<8x11xf32>
      %70 = vector.broadcast %64 : vector<8x1xf32> to vector<8x11xf32>
      %71 = arith.addf %70, %69 : vector<8x11xf32>
      %c0_37 = arith.constant 0 : index
      %c1_38 = arith.constant 1 : index
      %c0_39 = arith.constant 0 : index
      %c0_40 = arith.constant 0 : index
      %72 = vector.load %arg2[%c0_37, %c1_38, %c0_39, %c0_40] : memref<1x3x8x11xf32, #tpu.memory_space<vmem>>, vector<1x1x8x11xf32>
      %73 = vector.shape_cast %72 : vector<1x1x8x11xf32> to vector<8x11xf32>
      %74 = vector.extract_strided_slice %63 {offsets = [0, 1], sizes = [8, 1], strides = [1, 1]} : vector<8x12xf32> to vector<8x1xf32>
      %75 = vector.broadcast %74 : vector<8x1xf32> to vector<8x11xf32>
      %76 = arith.mulf %73, %75 : vector<8x11xf32>
      %77 = arith.addf %71, %76 : vector<8x11xf32>
      %c0_41 = arith.constant 0 : index
      %c2_42 = arith.constant 2 : index
      %c0_43 = arith.constant 0 : index
      %c0_44 = arith.constant 0 : index
      %78 = vector.load %arg2[%c0_41, %c2_42, %c0_43, %c0_44] : memref<1x3x8x11xf32, #tpu.memory_space<vmem>>, vector<1x1x8x11xf32>
      %79 = vector.shape_cast %78 : vector<1x1x8x11xf32> to vector<8x11xf32>
      %80 = vector.extract_strided_slice %63 {offsets = [0, 2], sizes = [8, 1], strides = [1, 1]} : vector<8x12xf32> to vector<8x1xf32>
      %81 = vector.broadcast %80 : vector<8x1xf32> to vector<8x11xf32>
      %82 = arith.mulf %79, %81 : vector<8x11xf32>
      %83 = arith.addf %77, %82 : vector<8x11xf32>
      %84 = arith.truncf %83 : vector<8x11xf32> to vector<8x11xbf16>
      %c0_45 = arith.constant 0 : index
      %c0_46 = arith.constant 0 : index
      %c0_47 = arith.constant 0 : index
      %85 = vector.load %arg4[%c0_45, %c0_46, %c0_47] : memref<3x11x1536xbf16, #tpu.memory_space<vmem>>, vector<1x11x1536xbf16>
      %86 = vector.shape_cast %85 : vector<1x11x1536xbf16> to vector<11x1536xbf16>
      %cst_48 = arith.constant dense<0.000000e+00> : vector<8x1536xf32>
      %87 = tpu.matmul %84, %86, %cst_48 {dimension_numbers = #tpu.dot_dimension_numbers<[1], [0], [0], [1], [0, 0, 1, 1], [], []>} : vector<8x11xbf16>, vector<11x1536xbf16>, vector<8x1536xf32> -> vector<8x1536xf32>
      %88 = vector.extract_strided_slice %63 {offsets = [0, 10], sizes = [8, 1], strides = [1, 1]} : vector<8x12xf32> to vector<8x1xf32>
      %c0_49 = arith.constant 0 : index
      %c0_50 = arith.constant 0 : index
      %c0_51 = arith.constant 0 : index
      %c0_52 = arith.constant 0 : index
      %89 = vector.load %arg2[%c0_49, %c0_50, %c0_51, %c0_52] : memref<1x3x8x11xf32, #tpu.memory_space<vmem>>, vector<1x1x8x11xf32>
      %90 = vector.shape_cast %89 : vector<1x1x8x11xf32> to vector<8x11xf32>
      %91 = vector.extract_strided_slice %63 {offsets = [0, 3], sizes = [8, 1], strides = [1, 1]} : vector<8x12xf32> to vector<8x1xf32>
      %92 = vector.broadcast %91 : vector<8x1xf32> to vector<8x11xf32>
      %93 = arith.mulf %90, %92 : vector<8x11xf32>
      %94 = vector.broadcast %88 : vector<8x1xf32> to vector<8x11xf32>
      %95 = arith.addf %94, %93 : vector<8x11xf32>
      %c0_53 = arith.constant 0 : index
      %c1_54 = arith.constant 1 : index
      %c0_55 = arith.constant 0 : index
      %c0_56 = arith.constant 0 : index
      %96 = vector.load %arg2[%c0_53, %c1_54, %c0_55, %c0_56] : memref<1x3x8x11xf32, #tpu.memory_space<vmem>>, vector<1x1x8x11xf32>
      %97 = vector.shape_cast %96 : vector<1x1x8x11xf32> to vector<8x11xf32>
      %98 = vector.extract_strided_slice %63 {offsets = [0, 4], sizes = [8, 1], strides = [1, 1]} : vector<8x12xf32> to vector<8x1xf32>
      %99 = vector.broadcast %98 : vector<8x1xf32> to vector<8x11xf32>
      %100 = arith.mulf %97, %99 : vector<8x11xf32>
      %101 = arith.addf %95, %100 : vector<8x11xf32>
      %c0_57 = arith.constant 0 : index
      %c2_58 = arith.constant 2 : index
      %c0_59 = arith.constant 0 : index
      %c0_60 = arith.constant 0 : index
      %102 = vector.load %arg2[%c0_57, %c2_58, %c0_59, %c0_60] : memref<1x3x8x11xf32, #tpu.memory_space<vmem>>, vector<1x1x8x11xf32>
      %103 = vector.shape_cast %102 : vector<1x1x8x11xf32> to vector<8x11xf32>
      %104 = vector.extract_strided_slice %63 {offsets = [0, 5], sizes = [8, 1], strides = [1, 1]} : vector<8x12xf32> to vector<8x1xf32>
      %105 = vector.broadcast %104 : vector<8x1xf32> to vector<8x11xf32>
      %106 = arith.mulf %103, %105 : vector<8x11xf32>
      %107 = arith.addf %101, %106 : vector<8x11xf32>
      %108 = arith.truncf %107 : vector<8x11xf32> to vector<8x11xbf16>
      %c1_61 = arith.constant 1 : index
      %c0_62 = arith.constant 0 : index
      %c0_63 = arith.constant 0 : index
      %109 = vector.load %arg4[%c1_61, %c0_62, %c0_63] : memref<3x11x1536xbf16, #tpu.memory_space<vmem>>, vector<1x11x1536xbf16>
      %110 = vector.shape_cast %109 : vector<1x11x1536xbf16> to vector<11x1536xbf16>
      %cst_64 = arith.constant dense<0.000000e+00> : vector<8x1536xf32>
      %111 = tpu.matmul %108, %110, %cst_64 {dimension_numbers = #tpu.dot_dimension_numbers<[1], [0], [0], [1], [0, 0, 1, 1], [], []>} : vector<8x11xbf16>, vector<11x1536xbf16>, vector<8x1536xf32> -> vector<8x1536xf32>
      %112 = arith.addf %87, %111 : vector<8x1536xf32>
      %113 = vector.extract_strided_slice %63 {offsets = [0, 11], sizes = [8, 1], strides = [1, 1]} : vector<8x12xf32> to vector<8x1xf32>
      %c0_65 = arith.constant 0 : index
      %c0_66 = arith.constant 0 : index
      %c0_67 = arith.constant 0 : index
      %c0_68 = arith.constant 0 : index
      %114 = vector.load %arg2[%c0_65, %c0_66, %c0_67, %c0_68] : memref<1x3x8x11xf32, #tpu.memory_space<vmem>>, vector<1x1x8x11xf32>
      %115 = vector.shape_cast %114 : vector<1x1x8x11xf32> to vector<8x11xf32>
      %116 = vector.extract_strided_slice %63 {offsets = [0, 6], sizes = [8, 1], strides = [1, 1]} : vector<8x12xf32> to vector<8x1xf32>
      %117 = vector.broadcast %116 : vector<8x1xf32> to vector<8x11xf32>
      %118 = arith.mulf %115, %117 : vector<8x11xf32>
      %119 = vector.broadcast %113 : vector<8x1xf32> to vector<8x11xf32>
      %120 = arith.addf %119, %118 : vector<8x11xf32>
      %c0_69 = arith.constant 0 : index
      %c1_70 = arith.constant 1 : index
      %c0_71 = arith.constant 0 : index
      %c0_72 = arith.constant 0 : index
      %121 = vector.load %arg2[%c0_69, %c1_70, %c0_71, %c0_72] : memref<1x3x8x11xf32, #tpu.memory_space<vmem>>, vector<1x1x8x11xf32>
      %122 = vector.shape_cast %121 : vector<1x1x8x11xf32> to vector<8x11xf32>
      %123 = vector.extract_strided_slice %63 {offsets = [0, 7], sizes = [8, 1], strides = [1, 1]} : vector<8x12xf32> to vector<8x1xf32>
      %124 = vector.broadcast %123 : vector<8x1xf32> to vector<8x11xf32>
      %125 = arith.mulf %122, %124 : vector<8x11xf32>
      %126 = arith.addf %120, %125 : vector<8x11xf32>
      %c0_73 = arith.constant 0 : index
      %c2_74 = arith.constant 2 : index
      %c0_75 = arith.constant 0 : index
      %c0_76 = arith.constant 0 : index
      %127 = vector.load %arg2[%c0_73, %c2_74, %c0_75, %c0_76] : memref<1x3x8x11xf32, #tpu.memory_space<vmem>>, vector<1x1x8x11xf32>
      %128 = vector.shape_cast %127 : vector<1x1x8x11xf32> to vector<8x11xf32>
      %129 = vector.extract_strided_slice %63 {offsets = [0, 8], sizes = [8, 1], strides = [1, 1]} : vector<8x12xf32> to vector<8x1xf32>
      %130 = vector.broadcast %129 : vector<8x1xf32> to vector<8x11xf32>
      %131 = arith.mulf %128, %130 : vector<8x11xf32>
      %132 = arith.addf %126, %131 : vector<8x11xf32>
      %133 = arith.truncf %132 : vector<8x11xf32> to vector<8x11xbf16>
      %c2_77 = arith.constant 2 : index
      %c0_78 = arith.constant 0 : index
      %c0_79 = arith.constant 0 : index
      %134 = vector.load %arg4[%c2_77, %c0_78, %c0_79] : memref<3x11x1536xbf16, #tpu.memory_space<vmem>>, vector<1x11x1536xbf16>
      %135 = vector.shape_cast %134 : vector<1x11x1536xbf16> to vector<11x1536xbf16>
      %cst_80 = arith.constant dense<0.000000e+00> : vector<8x1536xf32>
      %136 = tpu.matmul %133, %135, %cst_80 {dimension_numbers = #tpu.dot_dimension_numbers<[1], [0], [0], [1], [0, 0, 1, 1], [], []>} : vector<8x11xbf16>, vector<11x1536xbf16>, vector<8x1536xf32> -> vector<8x1536xf32>
      %137 = arith.addf %112, %136 : vector<8x1536xf32>
      %138 = vector.extract_strided_slice %137 {offsets = [0, 0], sizes = [8, 128], strides = [1, 1]} : vector<8x1536xf32> to vector<8x128xf32>
      %139 = arith.truncf %138 : vector<8x128xf32> to vector<8x128xbf16>
      %c0_81 = arith.constant 0 : index
      %c0_82 = arith.constant 0 : index
      %c0_83 = arith.constant 0 : index
      %140 = vector.load %arg8[%c0_81, %c0_82, %c0_83] : memref<4x8x128xbf16, #tpu.memory_space<vmem>>, vector<1x8x128xbf16>
      %141 = vector.shape_cast %140 : vector<1x8x128xbf16> to vector<8x128xbf16>
      %142 = vector.shape_cast %139 : vector<8x128xbf16> to vector<1x8x128xbf16>
      tpu.vector_store %arg8[%c0_81, %c0_82, %c0_83], %142 {strides = array<i32>} : memref<4x8x128xbf16, #tpu.memory_space<vmem>>, vector<1x8x128xbf16>,
      %143 = vector.extract_strided_slice %137 {offsets = [0, 512], sizes = [8, 128], strides = [1, 1]} : vector<8x1536xf32> to vector<8x128xf32>
      %144 = arith.truncf %143 : vector<8x128xf32> to vector<8x128xbf16>
      %c0_84 = arith.constant 0 : index
      %c0_85 = arith.constant 0 : index
      %c0_86 = arith.constant 0 : index
      %145 = vector.load %arg9[%c0_84, %c0_85, %c0_86] : memref<4x8x128xbf16, #tpu.memory_space<vmem>>, vector<1x8x128xbf16>
      %146 = vector.shape_cast %145 : vector<1x8x128xbf16> to vector<8x128xbf16>
      %147 = vector.shape_cast %144 : vector<8x128xbf16> to vector<1x8x128xbf16>
      tpu.vector_store %arg9[%c0_84, %c0_85, %c0_86], %147 {strides = array<i32>} : memref<4x8x128xbf16, #tpu.memory_space<vmem>>, vector<1x8x128xbf16>,
      %148 = vector.extract_strided_slice %137 {offsets = [0, 1024], sizes = [8, 128], strides = [1, 1]} : vector<8x1536xf32> to vector<8x128xf32>
      %149 = arith.truncf %148 : vector<8x128xf32> to vector<8x128xbf16>
      %c0_87 = arith.constant 0 : index
      %c0_88 = arith.constant 0 : index
      %c0_89 = arith.constant 0 : index
      %150 = vector.load %arg10[%c0_87, %c0_88, %c0_89] : memref<4x8x128xbf16, #tpu.memory_space<vmem>>, vector<1x8x128xbf16>
      %151 = vector.shape_cast %150 : vector<1x8x128xbf16> to vector<8x128xbf16>
      %152 = vector.shape_cast %149 : vector<8x128xbf16> to vector<1x8x128xbf16>
      tpu.vector_store %arg10[%c0_87, %c0_88, %c0_89], %152 {strides = array<i32>} : memref<4x8x128xbf16, #tpu.memory_space<vmem>>, vector<1x8x128xbf16>,
      %153 = vector.extract_strided_slice %137 {offsets = [0, 128], sizes = [8, 128], strides = [1, 1]} : vector<8x1536xf32> to vector<8x128xf32>
      %154 = arith.truncf %153 : vector<8x128xf32> to vector<8x128xbf16>
      %c1_90 = arith.constant 1 : index
      %c0_91 = arith.constant 0 : index
      %c0_92 = arith.constant 0 : index
      %155 = vector.load %arg8[%c1_90, %c0_91, %c0_92] : memref<4x8x128xbf16, #tpu.memory_space<vmem>>, vector<1x8x128xbf16>
      %156 = vector.shape_cast %155 : vector<1x8x128xbf16> to vector<8x128xbf16>
      %157 = vector.shape_cast %154 : vector<8x128xbf16> to vector<1x8x128xbf16>
      tpu.vector_store %arg8[%c1_90, %c0_91, %c0_92], %157 {strides = array<i32>} : memref<4x8x128xbf16, #tpu.memory_space<vmem>>, vector<1x8x128xbf16>,
      %158 = vector.extract_strided_slice %137 {offsets = [0, 640], sizes = [8, 128], strides = [1, 1]} : vector<8x1536xf32> to vector<8x128xf32>
      %159 = arith.truncf %158 : vector<8x128xf32> to vector<8x128xbf16>
      %c1_93 = arith.constant 1 : index
      %c0_94 = arith.constant 0 : index
      %c0_95 = arith.constant 0 : index
      %160 = vector.load %arg9[%c1_93, %c0_94, %c0_95] : memref<4x8x128xbf16, #tpu.memory_space<vmem>>, vector<1x8x128xbf16>
      %161 = vector.shape_cast %160 : vector<1x8x128xbf16> to vector<8x128xbf16>
      %162 = vector.shape_cast %159 : vector<8x128xbf16> to vector<1x8x128xbf16>
      tpu.vector_store %arg9[%c1_93, %c0_94, %c0_95], %162 {strides = array<i32>} : memref<4x8x128xbf16, #tpu.memory_space<vmem>>, vector<1x8x128xbf16>,
      %163 = vector.extract_strided_slice %137 {offsets = [0, 1152], sizes = [8, 128], strides = [1, 1]} : vector<8x1536xf32> to vector<8x128xf32>
      %164 = arith.truncf %163 : vector<8x128xf32> to vector<8x128xbf16>
      %c1_96 = arith.constant 1 : index
      %c0_97 = arith.constant 0 : index
      %c0_98 = arith.constant 0 : index
      %165 = vector.load %arg10[%c1_96, %c0_97, %c0_98] : memref<4x8x128xbf16, #tpu.memory_space<vmem>>, vector<1x8x128xbf16>
      %166 = vector.shape_cast %165 : vector<1x8x128xbf16> to vector<8x128xbf16>
      %167 = vector.shape_cast %164 : vector<8x128xbf16> to vector<1x8x128xbf16>
      tpu.vector_store %arg10[%c1_96, %c0_97, %c0_98], %167 {strides = array<i32>} : memref<4x8x128xbf16, #tpu.memory_space<vmem>>, vector<1x8x128xbf16>,
      %168 = vector.extract_strided_slice %137 {offsets = [0, 256], sizes = [8, 128], strides = [1, 1]} : vector<8x1536xf32> to vector<8x128xf32>
      %169 = arith.truncf %168 : vector<8x128xf32> to vector<8x128xbf16>
      %c2_99 = arith.constant 2 : index
      %c0_100 = arith.constant 0 : index
      %c0_101 = arith.constant 0 : index
      %170 = vector.load %arg8[%c2_99, %c0_100, %c0_101] : memref<4x8x128xbf16, #tpu.memory_space<vmem>>, vector<1x8x128xbf16>
      %171 = vector.shape_cast %170 : vector<1x8x128xbf16> to vector<8x128xbf16>
      %172 = vector.shape_cast %169 : vector<8x128xbf16> to vector<1x8x128xbf16>
      tpu.vector_store %arg8[%c2_99, %c0_100, %c0_101], %172 {strides = array<i32>} : memref<4x8x128xbf16, #tpu.memory_space<vmem>>, vector<1x8x128xbf16>,
      %173 = vector.extract_strided_slice %137 {offsets = [0, 768], sizes = [8, 128], strides = [1, 1]} : vector<8x1536xf32> to vector<8x128xf32>
      %174 = arith.truncf %173 : vector<8x128xf32> to vector<8x128xbf16>
      %c2_102 = arith.constant 2 : index
      %c0_103 = arith.constant 0 : index
      %c0_104 = arith.constant 0 : index
      %175 = vector.load %arg9[%c2_102, %c0_103, %c0_104] : memref<4x8x128xbf16, #tpu.memory_space<vmem>>, vector<1x8x128xbf16>
      %176 = vector.shape_cast %175 : vector<1x8x128xbf16> to vector<8x128xbf16>
      %177 = vector.shape_cast %174 : vector<8x128xbf16> to vector<1x8x128xbf16>
      tpu.vector_store %arg9[%c2_102, %c0_103, %c0_104], %177 {strides = array<i32>} : memref<4x8x128xbf16, #tpu.memory_space<vmem>>, vector<1x8x128xbf16>,
      %178 = vector.extract_strided_slice %137 {offsets = [0, 1280], sizes = [8, 128], strides = [1, 1]} : vector<8x1536xf32> to vector<8x128xf32>
      %179 = arith.truncf %178 : vector<8x128xf32> to vector<8x128xbf16>
      %c2_105 = arith.constant 2 : index
      %c0_106 = arith.constant 0 : index
      %c0_107 = arith.constant 0 : index
      %180 = vector.load %arg10[%c2_105, %c0_106, %c0_107] : memref<4x8x128xbf16, #tpu.memory_space<vmem>>, vector<1x8x128xbf16>
      %181 = vector.shape_cast %180 : vector<1x8x128xbf16> to vector<8x128xbf16>
      %182 = vector.shape_cast %179 : vector<8x128xbf16> to vector<1x8x128xbf16>
      tpu.vector_store %arg10[%c2_105, %c0_106, %c0_107], %182 {strides = array<i32>} : memref<4x8x128xbf16, #tpu.memory_space<vmem>>, vector<1x8x128xbf16>,
      %183 = vector.extract_strided_slice %137 {offsets = [0, 384], sizes = [8, 128], strides = [1, 1]} : vector<8x1536xf32> to vector<8x128xf32>
      %184 = arith.truncf %183 : vector<8x128xf32> to vector<8x128xbf16>
      %c3_108 = arith.constant 3 : index
      %c0_109 = arith.constant 0 : index
      %c0_110 = arith.constant 0 : index
      %185 = vector.load %arg8[%c3_108, %c0_109, %c0_110] : memref<4x8x128xbf16, #tpu.memory_space<vmem>>, vector<1x8x128xbf16>
      %186 = vector.shape_cast %185 : vector<1x8x128xbf16> to vector<8x128xbf16>
      %187 = vector.shape_cast %184 : vector<8x128xbf16> to vector<1x8x128xbf16>
      tpu.vector_store %arg8[%c3_108, %c0_109, %c0_110], %187 {strides = array<i32>} : memref<4x8x128xbf16, #tpu.memory_space<vmem>>, vector<1x8x128xbf16>,
      %188 = vector.extract_strided_slice %137 {offsets = [0, 896], sizes = [8, 128], strides = [1, 1]} : vector<8x1536xf32> to vector<8x128xf32>
      %189 = arith.truncf %188 : vector<8x128xf32> to vector<8x128xbf16>
      %c3_111 = arith.constant 3 : index
      %c0_112 = arith.constant 0 : index
      %c0_113 = arith.constant 0 : index
      %190 = vector.load %arg9[%c3_111, %c0_112, %c0_113] : memref<4x8x128xbf16, #tpu.memory_space<vmem>>, vector<1x8x128xbf16>
      %191 = vector.shape_cast %190 : vector<1x8x128xbf16> to vector<8x128xbf16>
      %192 = vector.shape_cast %189 : vector<8x128xbf16> to vector<1x8x128xbf16>
      tpu.vector_store %arg9[%c3_111, %c0_112, %c0_113], %192 {strides = array<i32>} : memref<4x8x128xbf16, #tpu.memory_space<vmem>>, vector<1x8x128xbf16>,
      %193 = vector.extract_strided_slice %137 {offsets = [0, 1408], sizes = [8, 128], strides = [1, 1]} : vector<8x1536xf32> to vector<8x128xf32>
      %194 = arith.truncf %193 : vector<8x128xf32> to vector<8x128xbf16>
      %c3_114 = arith.constant 3 : index
      %c0_115 = arith.constant 0 : index
      %c0_116 = arith.constant 0 : index
      %195 = vector.load %arg10[%c3_114, %c0_115, %c0_116] : memref<4x8x128xbf16, #tpu.memory_space<vmem>>, vector<1x8x128xbf16>
      %196 = vector.shape_cast %195 : vector<1x8x128xbf16> to vector<8x128xbf16>
      %197 = vector.shape_cast %194 : vector<8x128xbf16> to vector<1x8x128xbf16>
      tpu.vector_store %arg10[%c3_114, %c0_115, %c0_116], %197 {strides = array<i32>} : memref<4x8x128xbf16, #tpu.memory_space<vmem>>, vector<1x8x128xbf16>,
    } else {
    }
    %c8_i32 = arith.constant 8 : i32
    %3 = arith.muli %arg1, %c8_i32 : i32
    %4 = tpu.assume_multiple %3, 8 : i32
    %c0 = arith.constant 0 : index
    %5 = arith.index_cast %4 : i32 to index
    %c0_1 = arith.constant 0 : index
    %6 = vector.load %arg8[%c0, %5, %c0_1] : memref<4x8x128xbf16, #tpu.memory_space<vmem>>, vector<4x8x128xbf16>
    %c0_2 = arith.constant 0 : index
    %c0_3 = arith.constant 0 : index
    %c0_4 = arith.constant 0 : index
    %7 = vector.load %arg9[%c0_2, %c0_3, %c0_4] : memref<4x8x128xbf16, #tpu.memory_space<vmem>>, vector<4x8x128xbf16>
    "tpu.trace_start"() <{level = 10 : i32, message = "hqd,hkd->hqk"}> : () -> ()
    %cst = arith.constant dense<0.000000e+00> : vector<4x8x8xf32>
    %8 = tpu.matmul %6, %7, %cst {dimension_numbers = #tpu.dot_dimension_numbers<[2], [2], [1], [1], [0, 0, 0, 1, 1, 1], [0], [0]>} : vector<4x8x128xbf16>, vector<4x8x128xbf16>, vector<4x8x8xf32> -> vector<4x8x8xf32>
    "tpu.trace_stop"() : () -> ()
    %9 = tpu.iota {dimensions = array<i32: 0>} : vector<8x8xi32>
    %10 = vector.broadcast %4 : i32 to vector<8x8xi32>
    %11 = arith.addi %10, %9 : vector<8x8xi32>
    %12 = tpu.iota {dimensions = array<i32: 1>} : vector<8x8xi32>
    %13 = arith.cmpi sgt, %12, %11 : vector<8x8xi32>
    %14 = vector.shape_cast %13 : vector<8x8xi1> to vector<1x8x8xi1>
    %cst_5 = arith.constant 0xFF800000 : f32
    %15 = vector.shape_cast %14 : vector<1x8x8xi1> to vector<1x8x8xi1>
    %16 = vector.broadcast %15 : vector<1x8x8xi1> to vector<4x8x8xi1>
    %17 = vector.broadcast %cst_5 : f32 to vector<4x8x8xf32>
    %18 = arith.select %16, %17, %8 : vector<4x8x8xi1>, vector<4x8x8xf32>
    %cst_6 = arith.constant dense<0xFF800000> : vector<4x8xf32>
    %19 = vector.multi_reduction <maximumf>, %18, %cst_6 [2] : vector<4x8x8xf32> to vector<4x8xf32>
    %20 = vector.shape_cast %19 : vector<4x8xf32> to vector<4x8x1xf32>
    %21 = vector.broadcast %20 : vector<4x8x1xf32> to vector<4x8x8xf32>
    %22 = arith.subf %18, %21 : vector<4x8x8xf32>
    %23 = math.exp %22 : vector<4x8x8xf32>
    %cst_7 = arith.constant dense<0.000000e+00> : vector<4x8xf32>
    %24 = vector.multi_reduction <add>, %23, %cst_7 [2] : vector<4x8x8xf32> to vector<4x8xf32>
    %25 = vector.shape_cast %24 : vector<4x8xf32> to vector<4x8x1xf32>
    %26 = tpu.reciprocal %25 {approx = true} : vector<4x8x1xf32> -> vector<4x8x1xf32>
    %27 = vector.broadcast %26 : vector<4x8x1xf32> to vector<4x8x8xf32>
    %28 = arith.mulf %23, %27 : vector<4x8x8xf32>
    %c0_8 = arith.constant 0 : index
    %c0_9 = arith.constant 0 : index
    %c0_10 = arith.constant 0 : index
    %c0_11 = arith.constant 0 : index
    %29 = vector.load %arg7[%c0_8, %c0_9, %c0_10, %c0_11] : memref<1x4x8x8xf32, #tpu.memory_space<vmem>>, vector<1x4x8x8xf32>
    %30 = vector.shape_cast %29 : vector<1x4x8x8xf32> to vector<4x8x8xf32>
    %31 = vector.shape_cast %28 : vector<4x8x8xf32> to vector<1x4x8x8xf32>
    tpu.vector_store %arg7[%c0_8, %c0_9, %c0_10, %c0_11], %31 {strides = array<i32>} : memref<1x4x8x8xf32, #tpu.memory_space<vmem>>, vector<1x4x8x8xf32>,
    %32 = vector.extract_strided_slice %28 {offsets = [0, 0, 0], sizes = [1, 8, 8], strides = [1, 1, 1]} : vector<4x8x8xf32> to vector<1x8x8xf32>
    %33 = vector.shape_cast %32 : vector<1x8x8xf32> to vector<8x8xf32>
    %34 = arith.truncf %33 : vector<8x8xf32> to vector<8x8xbf16>
    %c0_12 = arith.constant 0 : index
    %c0_13 = arith.constant 0 : index
    %c0_14 = arith.constant 0 : index
    %35 = vector.load %arg10[%c0_12, %c0_13, %c0_14] : memref<4x8x128xbf16, #tpu.memory_space<vmem>>, vector<1x8x128xbf16>
    %36 = vector.shape_cast %35 : vector<1x8x128xbf16> to vector<8x128xbf16>
    %cst_15 = arith.constant dense<0.000000e+00> : vector<8x128xf32>
    %37 = tpu.matmul %34, %36, %cst_15 {dimension_numbers = #tpu.dot_dimension_numbers<[1], [0], [0], [1], [0, 0, 1, 1], [], []>} : vector<8x8xbf16>, vector<8x128xbf16>, vector<8x128xf32> -> vector<8x128xf32>
    %38 = vector.extract_strided_slice %28 {offsets = [1, 0, 0], sizes = [1, 8, 8], strides = [1, 1, 1]} : vector<4x8x8xf32> to vector<1x8x8xf32>
    %39 = vector.shape_cast %38 : vector<1x8x8xf32> to vector<8x8xf32>
    %40 = arith.truncf %39 : vector<8x8xf32> to vector<8x8xbf16>
    %c1 = arith.constant 1 : index
    %c0_16 = arith.constant 0 : index
    %c0_17 = arith.constant 0 : index
    %41 = vector.load %arg10[%c1, %c0_16, %c0_17] : memref<4x8x128xbf16, #tpu.memory_space<vmem>>, vector<1x8x128xbf16>
    %42 = vector.shape_cast %41 : vector<1x8x128xbf16> to vector<8x128xbf16>
    %cst_18 = arith.constant dense<0.000000e+00> : vector<8x128xf32>
    %43 = tpu.matmul %40, %42, %cst_18 {dimension_numbers = #tpu.dot_dimension_numbers<[1], [0], [0], [1], [0, 0, 1, 1], [], []>} : vector<8x8xbf16>, vector<8x128xbf16>, vector<8x128xf32> -> vector<8x128xf32>
    %44 = vector.extract_strided_slice %28 {offsets = [2, 0, 0], sizes = [1, 8, 8], strides = [1, 1, 1]} : vector<4x8x8xf32> to vector<1x8x8xf32>
    %45 = vector.shape_cast %44 : vector<1x8x8xf32> to vector<8x8xf32>
    %46 = arith.truncf %45 : vector<8x8xf32> to vector<8x8xbf16>
    %c2 = arith.constant 2 : index
    %c0_19 = arith.constant 0 : index
    %c0_20 = arith.constant 0 : index
    %47 = vector.load %arg10[%c2, %c0_19, %c0_20] : memref<4x8x128xbf16, #tpu.memory_space<vmem>>, vector<1x8x128xbf16>
    %48 = vector.shape_cast %47 : vector<1x8x128xbf16> to vector<8x128xbf16>
    %cst_21 = arith.constant dense<0.000000e+00> : vector<8x128xf32>
    %49 = tpu.matmul %46, %48, %cst_21 {dimension_numbers = #tpu.dot_dimension_numbers<[1], [0], [0], [1], [0, 0, 1, 1], [], []>} : vector<8x8xbf16>, vector<8x128xbf16>, vector<8x128xf32> -> vector<8x128xf32>
    %50 = vector.extract_strided_slice %28 {offsets = [3, 0, 0], sizes = [1, 8, 8], strides = [1, 1, 1]} : vector<4x8x8xf32> to vector<1x8x8xf32>
    %51 = vector.shape_cast %50 : vector<1x8x8xf32> to vector<8x8xf32>
    %52 = arith.truncf %51 : vector<8x8xf32> to vector<8x8xbf16>
    %c3 = arith.constant 3 : index
    %c0_22 = arith.constant 0 : index
    %c0_23 = arith.constant 0 : index
    %53 = vector.load %arg10[%c3, %c0_22, %c0_23] : memref<4x8x128xbf16, #tpu.memory_space<vmem>>, vector<1x8x128xbf16>
    %54 = vector.shape_cast %53 : vector<1x8x128xbf16> to vector<8x128xbf16>
    %cst_24 = arith.constant dense<0.000000e+00> : vector<8x128xf32>
    %55 = tpu.matmul %52, %54, %cst_24 {dimension_numbers = #tpu.dot_dimension_numbers<[1], [0], [0], [1], [0, 0, 1, 1], [], []>} : vector<8x8xbf16>, vector<8x128xbf16>, vector<8x128xf32> -> vector<8x128xf32>
    %56 = tpu.concatenate %37, %43, %49, %55 in 1 : vector<8x128xf32>, vector<8x128xf32>, vector<8x128xf32>, vector<8x128xf32> -> vector<8x512xf32>
    %57 = arith.truncf %56 : vector<8x512xf32> to vector<8x512xbf16>
    %c0_25 = arith.constant 0 : index
    %c0_26 = arith.constant 0 : index
    %58 = vector.load %arg5[%c0_25, %c0_26] : memref<512x128xbf16, #tpu.memory_space<vmem>>, vector<512x128xbf16>
    %cst_27 = arith.constant dense<0.000000e+00> : vector<8x128xf32>
    %59 = tpu.matmul %57, %58, %cst_27 {dimension_numbers = #tpu.dot_dimension_numbers<[1], [0], [0], [1], [0, 0, 1, 1], [], []>} : vector<8x512xbf16>, vector<512x128xbf16>, vector<8x128xf32> -> vector<8x128xf32>
    %c0_28 = arith.constant 0 : index
    %c0_29 = arith.constant 0 : index
    %c0_30 = arith.constant 0 : index
    %60 = vector.load %arg6[%c0_28, %c0_29, %c0_30] : memref<1x8x128xf32, #tpu.memory_space<vmem>>, vector<1x8x128xf32>
    %61 = vector.shape_cast %60 : vector<1x8x128xf32> to vector<8x128xf32>
    %62 = vector.shape_cast %59 : vector<8x128xf32> to vector<1x8x128xf32>
    tpu.vector_store %arg6[%c0_28, %c0_29, %c0_30], %62 {strides = array<i32>} : memref<1x8x128xf32, #tpu.memory_space<vmem>>, vector<1x8x128xf32>,
    return
  }
  func.func @transform_0(%arg0: i32, %arg1: i32) -> (i32, i32, i32, i32) {
    %c0_i32 = arith.constant 0 : i32
    %c0_i32_0 = arith.constant 0 : i32
    %c0_i32_1 = arith.constant 0 : i32
    %c0_i32_2 = arith.constant 0 : i32
    return %arg0, %c0_i32, %c0_i32_0, %c0_i32_1 : i32, i32, i32, i32
  }
  func.func @transform_1(%arg0: i32, %arg1: i32) -> (i32, i32) {
    %c0_i32 = arith.constant 0 : i32
    %c0_i32_0 = arith.constant 0 : i32
    %c0_i32_1 = arith.constant 0 : i32
    return %c0_i32, %c0_i32_0 : i32, i32
  }
  func.func @transform_2(%arg0: i32, %arg1: i32) -> (i32, i32, i32) {
    %c0_i32 = arith.constant 0 : i32
    %c0_i32_0 = arith.constant 0 : i32
    %c0_i32_1 = arith.constant 0 : i32
    %c0_i32_2 = arith.constant 0 : i32
    return %c0_i32, %c0_i32_0, %c0_i32_1 : i32, i32, i32
  }
  func.func @transform_3(%arg0: i32, %arg1: i32) -> (i32, i32) {
    %c0_i32 = arith.constant 0 : i32
    %c0_i32_0 = arith.constant 0 : i32
    %c0_i32_1 = arith.constant 0 : i32
    return %c0_i32, %c0_i32_0 : i32, i32
  }
  func.func @transform_4(%arg0: i32, %arg1: i32) -> (i32, i32, i32) {
    %c0_i32 = arith.constant 0 : i32
    %c0_i32_0 = arith.constant 0 : i32
    return %arg0, %arg1, %c0_i32 : i32, i32, i32
  }
  func.func @transform_5(%arg0: i32, %arg1: i32) -> (i32, i32, i32, i32) {
    %c0_i32 = arith.constant 0 : i32
    %c0_i32_0 = arith.constant 0 : i32
    %c0_i32_1 = arith.constant 0 : i32
    return %arg0, %c0_i32, %arg1, %c0_i32_0 : i32, i32, i32, i32
  }
}

</mosaic_0001>

<llo_original>
// kernel: tpu_custom_call.1
$region0: #{tpu_custom_call.1}
  #allocation0 [shape = 'u32[]', space=smem, size = 0x4, offset = 0x4, fixed_abs, tag = 'smem constant byte address 0x4 - core index']
  #allocation1 [shape = 'u32[144,128]{1,0:T(1,128)}', space=vmem, size = 0x12000, scoped, tag = 'internal scratch']
  #allocation2 [shape = 'bf16[4,8,128]{2,1,0:T(8,128)(2,1)}', space=vmem, size = 0x2000, scoped, tag = 'scratch operand']
  #allocation3 [shape = 'bf16[4,8,128]{2,1,0:T(8,128)(2,1)}', space=vmem, size = 0x2000, scoped, tag = 'scratch operand']
  #allocation4 [shape = 'bf16[4,8,128]{2,1,0:T(8,128)(2,1)}', space=vmem, size = 0x2000, scoped, tag = 'scratch operand']
  %s0 = inlined_call_operand.vmem [shape: f32[2,3,8,11], index: 0, kind: input, shape index: {}]
  %s1 = inlined_call_operand.vmem [shape: f32[8,12], index: 1, kind: input, shape index: {}]
  %s2 = inlined_call_operand.vmem [shape: bf16[3,11,1536], index: 2, kind: input, shape index: {}]
  %s3 = inlined_call_operand.vmem [shape: bf16[512,128], index: 3, kind: input, shape index: {}]
  %s4 = inlined_call_operand.hbm [shape: f32[2,8,128], index: 4, kind: output, shape index: {0}]
  %s5 = inlined_call_operand.hbm [shape: f32[2,4,8,8], index: 5, kind: output, shape index: {1}]
  %6 = xla_tuple %s4, %s5
  %s7 = sld [smem:[#allocation0]]
  $region61: #{tpu_custom_call.1} parent=0
    _
  %s9 = ssub.s32 1, %s7
  %s10 = scalar_select 0, %s9, %s7
  $region1: #{tpu_custom_call.1} parent=0
    #allocation5 [shape = 'u8[8192]{0}', space=vmem, size = 0x2000, scoped, tag = 'output window, operand 0']
    #allocation6 [shape = 's32[2]{0}', space=sflag, size = 0x8, scoped, tag = 'scoped memory for tpu_custom_call.1']
    #allocation7 [shape = 'u8[32768]{0}', space=vmem, size = 0x8000, scoped, tag = 'output window, operand 1']
    #allocation8 [shape = 's32[2]{0}', space=sflag, size = 0x8, scoped, tag = 'scoped memory for tpu_custom_call.1']
    %11 = vsyncpa [#allocation6], 0
    %s12 = scalar_lea.sflag [#allocation6], 1
    %13 = vsyncpa %s12, 0
    %14 = vsyncpa [#allocation8], 0
    %s15 = scalar_lea.sflag [#allocation8], 1
    %16 = vsyncpa %s15, 0
    loop: start=0, step=1, limit=4
    $region2: #{tpu_custom_call.1} parent=1 // loop_pre_header
      _
    $region3: #{tpu_custom_call.1} parent=1 // loop_header
      %s18 = sphi 0, %s22
      %p19 = scmp.ge.s32.totalorder %s18, 4
      %s25 = sphi 0, %s37
      %s26 = sphi 0, %s33
      %s27 = sphi 0, %s25
      %s28 = sphi 0, %s26
      %s29 = sphi 0, %s27
      %s30 = sphi 0, %s28
      %s40 = sphi 0, %s42
      %s43 = sphi 0, %s40
      %s44 = sphi 0, %s43
      %s60 = sphi 0, %s44
      %s64 = sphi 0, %s64
      %s66 = sphi 0, %s64
      %s67 = sphi 0, %s66
      %s81 = sphi 0, %s67
      %s85 = sphi 0, %s85
      %s87 = sphi 0, %s85
      %s88 = sphi 0, %s87
      %s102 = sphi 0, %s88
      %s106 = sphi 0, %s106
      %s108 = sphi 0, %s106
      %s109 = sphi 0, %s108
      %s123 = sphi 0, %s109
      %s131 = sphi 0, %s133
      %s134 = sphi 0, %s131
      %s135 = sphi 0, %s134
      %s151 = sphi 0, %s135
      %s159 = sphi 0, %s161
      %s162 = sphi 0, %s159
      %s163 = sphi 0, %s162
      %s179 = sphi 0, %s163
    $region4: #{tpu_custom_call.1} parent=1 // loop_header_branch
      %21 = sbr.rel (%p19) target = $region8
    $region5: #{tpu_custom_call.1} parent=1 // loop_body
      %s23 = ssub.s32 %s18, 1
      %s24 = ssub.s32 %s18, 2
      %s31 = sadd.s32 1, %s26
      %p32 = scmp.ge.s32.totalorder %s31, 1
      %s33 = scalar_select %p32, 0, %s31
      %s34 = sadd.s32 1, %s25
      %s35 = scalar_select %p32, %s34, %s25
      %p36 = scmp.ge.s32.totalorder %s35, 2
      %s37 = scalar_select %p36, 0, %s35
      %s38 = ssub.s32 %s25, %s37
      %p39 = scmp.eq.s32.totalorder %s38, 0
      %s41 = sadd.s32 %s40, 1
      %s42 = scalar_select %p39, %s40, %s41
      %p45 = pneg %p39
      %p46 = scmp.eq.s32.totalorder %s18, 1
      %p47 = por %p45, %p46
      %p48 = scmp.ne.s32.totalorder %s40, %s43
      %p49 = scmp.eq.s32.totalorder %s18, 0
      %p50 = por %p48, %p49
      %p51 = scmp.ne.s32.totalorder %s40, %s43
      %p52 = scmp.eq.s32.totalorder %s23, 1
      %p53 = por %p51, %p52
      %p54 = scmp.ne.s32.totalorder %s43, %s44
      %p55 = scmp.eq.s32.totalorder %s23, 0
      %p56 = por %p54, %p55
      %p57 = scmp.ne.s32.totalorder %s43, %s44
      %p58 = scmp.eq.s32.totalorder %s24, 1
      %p59 = por %p57, %p58
      %p61 = scmp.ne.s32.totalorder %s44, %s60
      %p62 = scmp.eq.s32.totalorder %s24, 0
      %p63 = por %p61, %p62
      %s65 = sadd.s32 %s64, 1
      %p68 = scmp.eq.s32.totalorder %s18, 1
      %p69 = scmp.ne.s32.totalorder %s64, %s66
      %p70 = scmp.eq.s32.totalorder %s18, 0
      %p71 = por %p69, %p70
      %p72 = scmp.ne.s32.totalorder %s64, %s66
      %p73 = scmp.eq.s32.totalorder %s23, 1
      %p74 = por %p72, %p73
      %p75 = scmp.ne.s32.totalorder %s66, %s67
      %p76 = scmp.eq.s32.totalorder %s23, 0
      %p77 = por %p75, %p76
      %p78 = scmp.ne.s32.totalorder %s66, %s67
      %p79 = scmp.eq.s32.totalorder %s24, 1
      %p80 = por %p78, %p79
      %p82 = scmp.ne.s32.totalorder %s67, %s81
      %p83 = scmp.eq.s32.totalorder %s24, 0
      %p84 = por %p82, %p83
      %s86 = sadd.s32 %s85, 1
      %p89 = scmp.eq.s32.totalorder %s18, 1
      %p90 = scmp.ne.s32.totalorder %s85, %s87
      %p91 = scmp.eq.s32.totalorder %s18, 0
      %p92 = por %p90, %p91
      %p93 = scmp.ne.s32.totalorder %s85, %s87
      %p94 = scmp.eq.s32.totalorder %s23, 1
      %p95 = por %p93, %p94
      %p96 = scmp.ne.s32.totalorder %s87, %s88
      %p97 = scmp.eq.s32.totalorder %s23, 0
      %p98 = por %p96, %p97
      %p99 = scmp.ne.s32.totalorder %s87, %s88
      %p100 = scmp.eq.s32.totalorder %s24, 1
      %p101 = por %p99, %p100
      %p103 = scmp.ne.s32.totalorder %s88, %s102
      %p104 = scmp.eq.s32.totalorder %s24, 0
      %p105 = por %p103, %p104
      %s107 = sadd.s32 %s106, 1
      %p110 = scmp.eq.s32.totalorder %s18, 1
      %p111 = scmp.ne.s32.totalorder %s106, %s108
      %p112 = scmp.eq.s32.totalorder %s18, 0
      %p113 = por %p111, %p112
      %p114 = scmp.ne.s32.totalorder %s106, %s108
      %p115 = scmp.eq.s32.totalorder %s23, 1
      %p116 = por %p114, %p115
      %p117 = scmp.ne.s32.totalorder %s108, %s109
      %p118 = scmp.eq.s32.totalorder %s23, 0
      %p119 = por %p117, %p118
      %p120 = scmp.ne.s32.totalorder %s108, %s109
      %p121 = scmp.eq.s32.totalorder %s24, 1
      %p122 = por %p120, %p121
      %p124 = scmp.ne.s32.totalorder %s109, %s123
      %p125 = scmp.eq.s32.totalorder %s24, 0
      %p126 = por %p124, %p125
      %s127 = ssub.s32 %s25, %s37
      %s128 = ssub.s32 %s26, %s33
      %s129 = sor.u32 %s127, %s128
      %p130 = scmp.eq.s32.totalorder %s129, 0
      %s132 = sadd.s32 %s131, 1
      %s133 = scalar_select %p130, %s131, %s132
      %p136 = pneg %p130
      %p137 = scmp.eq.s32.totalorder %s18, 1
      %p138 = por %p136, %p137
      %p139 = scmp.ne.s32.totalorder %s131, %s134
      %p140 = scmp.eq.s32.totalorder %s18, 0
      %p141 = por %p139, %p140
      %p142 = scmp.ne.s32.totalorder %s131, %s134
      %p143 = scmp.eq.s32.totalorder %s23, 1
      %p144 = por %p142, %p143
      %p145 = scmp.ne.s32.totalorder %s134, %s135
      %p146 = scmp.eq.s32.totalorder %s23, 0
      %p147 = por %p145, %p146
      %p148 = scmp.ne.s32.totalorder %s134, %s135
      %p149 = scmp.eq.s32.totalorder %s24, 1
      %p150 = por %p148, %p149
      %p152 = scmp.ne.s32.totalorder %s135, %s151
      %p153 = scmp.eq.s32.totalorder %s24, 0
      %p154 = por %p152, %p153
      %s155 = ssub.s32 %s25, %s37
      %s156 = ssub.s32 %s26, %s33
      %s157 = sor.u32 %s155, %s156
      %p158 = scmp.eq.s32.totalorder %s157, 0
      %s160 = sadd.s32 %s159, 1
      %s161 = scalar_select %p158, %s159, %s160
      %p164 = pneg %p158
      %p165 = scmp.eq.s32.totalorder %s18, 1
      %p166 = por %p164, %p165
      %p167 = scmp.ne.s32.totalorder %s159, %s162
      %p168 = scmp.eq.s32.totalorder %s18, 0
      %p169 = por %p167, %p168
      %p170 = scmp.ne.s32.totalorder %s159, %s162
      %p171 = scmp.eq.s32.totalorder %s23, 1
      %p172 = por %p170, %p171
      %p173 = scmp.ne.s32.totalorder %s162, %s163
      %p174 = scmp.eq.s32.totalorder %s23, 0
      %p175 = por %p173, %p174
      %p176 = scmp.ne.s32.totalorder %s162, %s163
      %p177 = scmp.eq.s32.totalorder %s24, 1
      %p178 = por %p176, %p177
      %p180 = scmp.ne.s32.totalorder %s163, %s179
      %p181 = scmp.eq.s32.totalorder %s24, 0
      %p182 = por %p180, %p181
      %p183 = scmp.le.s32.totalorder 1, %s18
      %p184 = scmp.lt.s32.totalorder %s18, 3
      %p185 = pnand %p183, %p184
      %p186 = pneg %p185
      // Predicated region
      $region9: #{tpu_custom_call.1} parent=5 // pred_check
        _
      $region10: #{tpu_custom_call.1} parent=5 // pred_check_branch
        %188 = sbr.rel (%p185) target = $region12
      $region11: #{tpu_custom_call.1} parent=5 // pred_region
        %s189 = ssub.s32 %s18, 1
        // Predicated region
        $region13: #{tpu_custom_call.1} parent=11 // pred_check
          %p190 = pneg %p77
        $region14: #{tpu_custom_call.1} parent=11 // pred_check_branch
          %192 = sbr.rel (%p190) target = $region16
        $region15: #{tpu_custom_call.1} parent=11 // pred_region
          _
        $region16: #{tpu_custom_call.1} parent=11 // pred_fallthru
          _
        // Predicated region
        $region17: #{tpu_custom_call.1} parent=11 // pred_check
          %p193 = pneg %p98
        $region18: #{tpu_custom_call.1} parent=11 // pred_check_branch
          %195 = sbr.rel (%p193) target = $region20
        $region19: #{tpu_custom_call.1} parent=11 // pred_region
          _
        $region20: #{tpu_custom_call.1} parent=11 // pred_fallthru
          _
        // Predicated region
        $region21: #{tpu_custom_call.1} parent=11 // pred_check
          %p196 = pneg %p119
        $region22: #{tpu_custom_call.1} parent=11 // pred_check_branch
          %198 = sbr.rel (%p196) target = $region24
        $region23: #{tpu_custom_call.1} parent=11 // pred_region
          _
        $region24: #{tpu_custom_call.1} parent=11 // pred_fallthru
          _
      $region12: #{tpu_custom_call.1} parent=5 // pred_fallthru
        _
      %p199 = scmp.lt.s32.totalorder %s18, 2
      // Predicated region
      $region25: #{tpu_custom_call.1} parent=5 // pred_check
        %p200 = pneg %p199
      $region26: #{tpu_custom_call.1} parent=5 // pred_check_branch
        %202 = sbr.rel (%p200) target = $region28
      $region27: #{tpu_custom_call.1} parent=5 // pred_region
        // Predicated region
        $region29: #{tpu_custom_call.1} parent=27 // pred_check
          %p203 = pneg %p50
        $region30: #{tpu_custom_call.1} parent=27 // pred_check_branch
          %205 = sbr.rel (%p203) target = $region32
        $region31: #{tpu_custom_call.1} parent=27 // pred_region
          %p206 = scmp.lt.s32.totalorder %s25, 1
          %s207 = scalar_select %p206, %s25, 1
          %s208 = smul.addr %s207, 3
          %s209 = smul.addr %s208, 8
          %s210 = scalar_lea.vmem %s0, %s209
        $region32: #{tpu_custom_call.1} parent=27 // pred_fallthru
          _
      $region28: #{tpu_custom_call.1} parent=5 // pred_fallthru
        _
      %p211 = scmp.le.s32.totalorder 1, %s18
      %p212 = scmp.lt.s32.totalorder %s18, 3
      %p213 = pnand %p211, %p212
      %p214 = pneg %p213
      // Predicated region
      $region33: #{tpu_custom_call.1} parent=5 // pred_check
        _
      $region34: #{tpu_custom_call.1} parent=5 // pred_check_branch
        %216 = sbr.rel (%p213) target = $region36
      $region35: #{tpu_custom_call.1} parent=5 // pred_region
        %s217 = ssub.s32 %s18, 1
        %p218 = scmp.lt.s32.totalorder %s27, 1
        %s219 = scalar_select %p218, %s27, 1
        %s220 = smul.addr %s219, 3
        %s221 = smul.addr %s220, 8
        %s222 = scalar_lea.vmem %s0, %s221
        %p223 = pneg %p56
        %p224 = pneg %p53
        %p225 = pneg %p77
        %p226 = pneg %p74
        %p227 = pneg %p98
        %p228 = pneg %p95
        %p229 = pneg %p119
        %p230 = pneg %p116
        %p231 = pneg %p147
        %p232 = pneg %p144
        %s233 = sand.u32 %s134, 1
        %s234 = scalar_lea.sflag [#allocation6], %s233
        %s235 = sand.u32 %s134, 1
        %s236 = smul.addr %s235, 8
        %s237 = scalar_lea.vmem [#allocation5], %s236
        %p238 = pneg %p175
        %p239 = pneg %p172
        %s240 = sand.u32 %s162, 1
        %s241 = scalar_lea.sflag [#allocation8], %s240
        %s242 = sand.u32 %s162, 1
        %s243 = smul.addr %s242, 32
        %s244 = scalar_lea.vmem [#allocation7], %s243
        %p245 = scmp.lt.s32.totalorder %s27, 1
        %s246 = scalar_select %p245, %s27, 1
        %s247 = smul.addr %s246, 3
        %s248 = smul.addr %s247, 8
        %s249 = scalar_lea.vmem %s0, %s248
        %p251 = scmp.eq.s32.totalorder %s28, 0
        // Predicated region
        $region37: #{tpu_custom_call.1} parent=35 // pred_check
          %p252 = pneg %p251
        $region38: #{tpu_custom_call.1} parent=35 // pred_check_branch
          %254 = sbr.rel (%p252) target = $region40
        $region39: #{tpu_custom_call.1} parent=35 // pred_region
          %v255 = vld [vmem:[%s1] sm:$0xff]
          %v256 = vld [vmem:[%s249] sm:$0xff]
          %258 = vset.pattern.permute.xlu0 0
          %259 = vperm.xlu0 %258, %v255
          %v260 = vpop.permute.xlu0 %259
          %v262 = vmul.f32 %v256, %v260
          %263 = vset.pattern.permute.xlu0 9
          %264 = vperm.xlu0 %263, %v255
          %v265 = vpop.permute.xlu0 %264
          %v267 = vadd.f32 %v265, %v262
          %s268 = scalar_lea.vmem %s249, 8
          %v269 = vld [vmem:[%s268] sm:$0xff]
          %270 = vset.pattern.permute.xlu0 1
          %271 = vperm.xlu0 %270, %v255
          %v272 = vpop.permute.xlu0 %271
          %v274 = vmul.f32 %v269, %v272
          %v275 = vadd.f32 %v267, %v274
          %s276 = scalar_lea.vmem %s249, 16
          %v277 = vld [vmem:[%s276] sm:$0xff]
          %278 = vset.pattern.permute.xlu0 2
          %279 = vperm.xlu0 %278, %v255
          %v280 = vpop.permute.xlu0 %279
          %v282 = vmul.f32 %v277, %v280
          %v283 = vadd.f32 %v275, %v282
          %v284 = vpack.c.bf16 %v283, %v283
          %v285 = vld [vmem:[%s2] sm:$0xff]
          %v286 = vld [vmem:[%s2 + $0x8] sm:$0xff]
          %v287 = vld [vmem:[%s2 + $0x10] sm:$0xff]
          %v288 = vld [vmem:[%s2 + $0x18] sm:$0xff]
          %v289 = vld [vmem:[%s2 + $0x20] sm:$0xff]
          %v290 = vld [vmem:[%s2 + $0x28] sm:$0xff]
          %v291 = vld [vmem:[%s2 + $0x30] sm:$0x33]
          %v292 = vld [vmem:[%s2 + $0x38] sm:$0x33]
          %v293 = vld [vmem:[%s2 + $0x40] sm:$0x33]
          %v294 = vld [vmem:[%s2 + $0x48] sm:$0x33]
          %v295 = vld [vmem:[%s2 + $0x50] sm:$0x33]
          %v296 = vld [vmem:[%s2 + $0x58] sm:$0x33]
          %297 = vset.pattern.permute.xlu0 3
          %298 = vperm.xlu0 %297, %v255
          %v299 = vpop.permute.xlu0 %298
          %v301 = vmul.f32 %v256, %v299
          %302 = vset.pattern.permute.xlu0 10
          %303 = vperm.xlu0 %302, %v255
          %v304 = vpop.permute.xlu0 %303
          %v306 = vadd.f32 %v304, %v301
          %307 = vset.pattern.permute.xlu0 4
          %308 = vperm.xlu0 %307, %v255
          %v309 = vpop.permute.xlu0 %308
          %v311 = vmul.f32 %v269, %v309
          %v312 = vadd.f32 %v306, %v311
          %313 = vset.pattern.permute.xlu0 5
          %314 = vperm.xlu0 %313, %v255
          %v315 = vpop.permute.xlu0 %314
          %v317 = vmul.f32 %v277, %v315
          %v318 = vadd.f32 %v312, %v317
          %v319 = vpack.c.bf16 %v318, %v318
          %s320 = scalar_lea.vmem %s2, 96
          %v321 = vld [vmem:[%s320] sm:$0xff]
          %v322 = vld [vmem:[%s320 + $0x8] sm:$0xff]
          %v323 = vld [vmem:[%s320 + $0x10] sm:$0xff]
          %v324 = vld [vmem:[%s320 + $0x18] sm:$0xff]
          %v325 = vld [vmem:[%s320 + $0x20] sm:$0xff]
          %v326 = vld [vmem:[%s320 + $0x28] sm:$0xff]
          %v327 = vld [vmem:[%s320 + $0x30] sm:$0x33]
          %v328 = vld [vmem:[%s320 + $0x38] sm:$0x33]
          %v329 = vld [vmem:[%s320 + $0x40] sm:$0x33]
          %v330 = vld [vmem:[%s320 + $0x48] sm:$0x33]
          %v331 = vld [vmem:[%s320 + $0x50] sm:$0x33]
          %v332 = vld [vmem:[%s320 + $0x58] sm:$0x33]
          %v345 = vunpack.c.l.b16 %v321
          %v346 = vunpack.c.h.b16 %v321
          %v347 = vunpack.c.l.b16 %v322
          %v348 = vunpack.c.h.b16 %v322
          %v349 = vunpack.c.l.b16 %v323
          %v350 = vunpack.c.h.b16 %v323
          %v351 = vunpack.c.l.b16 %v324
          %v352 = vunpack.c.h.b16 %v324
          %v353 = vunpack.c.l.b16 %v325
          %v354 = vunpack.c.h.b16 %v325
          %v355 = vunpack.c.l.b16 %v326
          %v356 = vunpack.c.h.b16 %v326
          %v357 = vunpack.c.l.b16 %v327
          %v358 = vunpack.c.h.b16 %v327
          %v359 = vunpack.c.l.b16 %v328
          %v360 = vunpack.c.h.b16 %v328
          %v361 = vunpack.c.l.b16 %v329
          %v362 = vunpack.c.h.b16 %v329
          %v363 = vunpack.c.l.b16 %v330
          %v364 = vunpack.c.h.b16 %v330
          %v365 = vunpack.c.l.b16 %v331
          %v366 = vunpack.c.h.b16 %v331
          %v367 = vunpack.c.l.b16 %v332
          %v368 = vunpack.c.h.b16 %v332
          %v369 = vpack.c.b16 %v357, %v345
          %v370 = vpack.c.b16 %v358, %v346
          %v371 = vpack.c.b16 %v359, %v347
          %v372 = vpack.c.b16 %v360, %v348
          %v373 = vpack.c.b16 %v361, %v349
          %v374 = vpack.c.b16 %v362, %v350
          %v375 = vpack.c.b16 %v363, %v351
          %v376 = vpack.c.b16 %v364, %v352
          %v377 = vpack.c.b16 %v365, %v353
          %v378 = vpack.c.b16 %v366, %v354
          %v379 = vpack.c.b16 %v367, %v355
          %v380 = vpack.c.b16 %v368, %v356
          %vm381 = vcmask 89088
          %v383 = vsel %vm381, %v319, 0
          %vm385 = vcmask 1044480
          %vm386 = vcmask 1045504
          %v387 = vsel %vm385, 4294967295, 65535
          %v388 = vsel %vm386, %v387, 0
          %v390 = vand.u32 %v369, %v388
          %v393 = vand.u32 %v370, %v388
          %v396 = vand.u32 %v371, %v388
          %v399 = vand.u32 %v372, %v388
          %v402 = vand.u32 %v373, %v388
          %v405 = vand.u32 %v374, %v388
          %v408 = vand.u32 %v375, %v388
          %v411 = vand.u32 %v376, %v388
          %v414 = vand.u32 %v377, %v388
          %v417 = vand.u32 %v378, %v388
          %v420 = vand.u32 %v379, %v388
          %v423 = vand.u32 %v380, %v388
          %425 = vmatprep.subr.bf16.mxu0 %v393
          %426 = vmatpush1.bf16.msra.mxu0 %v390
          %427 = vmatprep.subr.bf16.mxu0 0
          %428 = vmatpush1.bf16.msra.mxu0 0
          %429 = vmatprep.subr.bf16.mxu0 0
          %430 = vmatpush1.bf16.msra.mxu0 0
          %431 = vmatprep.subr.bf16.mxu0 0
          %432 = vmatpush1.bf16.msra.mxu0 0
          %433 = vmatprep.subr.bf16.mxu0 0
          %434 = vmatpush1.bf16.msra.mxu0 0
          %435 = vmatprep.subr.bf16.mxu0 0
          %436 = vmatpush1.bf16.msra.mxu0 0
          %437 = vmatprep.subr.bf16.mxu0 0
          %438 = vmatpush1.bf16.msra.mxu0 0
          %439 = vmatprep.subr.bf16.mxu0 0
          %440 = vmatpush1.bf16.msra.mxu0 0
          %441 = vmatprep.subr.bf16.mxu0 0
          %442 = vmatpush1.bf16.msra.mxu0 0
          %443 = vmatprep.subr.bf16.mxu0 0
          %444 = vmatpush1.bf16.msra.mxu0 0
          %445 = vmatprep.subr.bf16.mxu0 0
          %446 = vmatpush1.bf16.msra.mxu0 0
          %447 = vmatprep.subr.bf16.mxu0 0
          %448 = vmatpush1.bf16.msra.mxu0 0
          %449 = vmatprep.subr.bf16.mxu0 0
          %450 = vmatpush1.bf16.msra.mxu0 0
          %451 = vmatprep.subr.bf16.mxu0 0
          %452 = vmatpush1.bf16.msra.mxu0 0
          %453 = vmatprep.subr.bf16.mxu0 0
          %454 = vmatpush1.bf16.msra.mxu0 0
          %455 = vmatprep.subr.bf16.mxu0 0
          %456 = vmatpush1.bf16.msra.mxu0 0
          %457 = vmatprep.mubr.bf16.mxu0 0
          %458 = vmatmul.mubr.bf16.gmra.mrb[0].mxu0 %v383
          %v459 = vpop.f32.mrb[0].mxu0
          %v460 = vadd.f32 0.0, %v459
          %v461 = vpop.f32.mrb[0].mxu0
          %v462 = vadd.f32 0.0, %v461
          %v463 = vpop.f32.mrb[0].mxu0
          %v464 = vpop.f32.mrb[0].mxu0
          %465 = vdwg.mxu0
          %466 = vmatprep.subr.bf16.mxu0 %v399
          %467 = vmatpush1.bf16.msra.mxu0 %v396
          %468 = vmatprep.subr.bf16.mxu0 0
          %469 = vmatpush1.bf16.msra.mxu0 0
          %470 = vmatprep.subr.bf16.mxu0 0
          %471 = vmatpush1.bf16.msra.mxu0 0
          %472 = vmatprep.subr.bf16.mxu0 0
          %473 = vmatpush1.bf16.msra.mxu0 0
          %474 = vmatprep.subr.bf16.mxu0 0
          %475 = vmatpush1.bf16.msra.mxu0 0
          %476 = vmatprep.subr.bf16.mxu0 0
          %477 = vmatpush1.bf16.msra.mxu0 0
          %478 = vmatprep.subr.bf16.mxu0 0
          %479 = vmatpush1.bf16.msra.mxu0 0
          %480 = vmatprep.subr.bf16.mxu0 0
          %481 = vmatpush1.bf16.msra.mxu0 0
          %482 = vmatprep.subr.bf16.mxu0 0
          %483 = vmatpush1.bf16.msra.mxu0 0
          %484 = vmatprep.subr.bf16.mxu0 0
          %485 = vmatpush1.bf16.msra.mxu0 0
          %486 = vmatprep.subr.bf16.mxu0 0
          %487 = vmatpush1.bf16.msra.mxu0 0
          %488 = vmatprep.subr.bf16.mxu0 0
          %489 = vmatpush1.bf16.msra.mxu0 0
          %490 = vmatprep.subr.bf16.mxu0 0
          %491 = vmatpush1.bf16.msra.mxu0 0
          %492 = vmatprep.subr.bf16.mxu0 0
          %493 = vmatpush1.bf16.msra.mxu0 0
          %494 = vmatprep.subr.bf16.mxu0 0
          %495 = vmatpush1.bf16.msra.mxu0 0
          %496 = vmatprep.subr.bf16.mxu0 0
          %497 = vmatpush1.bf16.msra.mxu0 0
          %498 = vmatprep.mubr.bf16.mxu0 0
          %499 = vmatmul.mubr.bf16.gmra.mrb[0].mxu0 %v383
          %v500 = vpop.f32.mrb[0].mxu0
          %v501 = vadd.f32 0.0, %v500
          %v502 = vpop.f32.mrb[0].mxu0
          %v503 = vadd.f32 0.0, %v502
          %v504 = vpop.f32.mrb[0].mxu0
          %v505 = vpop.f32.mrb[0].mxu0
          %506 = vdwg.mxu0
          %507 = vmatprep.subr.bf16.mxu0 %v405
          %508 = vmatpush1.bf16.msra.mxu0 %v402
          %509 = vmatprep.subr.bf16.mxu0 0
          %510 = vmatpush1.bf16.msra.mxu0 0
          %511 = vmatprep.subr.bf16.mxu0 0
          %512 = vmatpush1.bf16.msra.mxu0 0
          %513 = vmatprep.subr.bf16.mxu0 0
          %514 = vmatpush1.bf16.msra.mxu0 0
          %515 = vmatprep.subr.bf16.mxu0 0
          %516 = vmatpush1.bf16.msra.mxu0 0
          %517 = vmatprep.subr.bf16.mxu0 0
          %518 = vmatpush1.bf16.msra.mxu0 0
          %519 = vmatprep.subr.bf16.mxu0 0
          %520 = vmatpush1.bf16.msra.mxu0 0
          %521 = vmatprep.subr.bf16.mxu0 0
          %522 = vmatpush1.bf16.msra.mxu0 0
          %523 = vmatprep.subr.bf16.mxu0 0
          %524 = vmatpush1.bf16.msra.mxu0 0
          %525 = vmatprep.subr.bf16.mxu0 0
          %526 = vmatpush1.bf16.msra.mxu0 0
          %527 = vmatprep.subr.bf16.mxu0 0
          %528 = vmatpush1.bf16.msra.mxu0 0
          %529 = vmatprep.subr.bf16.mxu0 0
          %530 = vmatpush1.bf16.msra.mxu0 0
          %531 = vmatprep.subr.bf16.mxu0 0
          %532 = vmatpush1.bf16.msra.mxu0 0
          %533 = vmatprep.subr.bf16.mxu0 0
          %534 = vmatpush1.bf16.msra.mxu0 0
          %535 = vmatprep.subr.bf16.mxu0 0
          %536 = vmatpush1.bf16.msra.mxu0 0
          %537 = vmatprep.subr.bf16.mxu0 0
          %538 = vmatpush1.bf16.msra.mxu0 0
          %539 = vmatprep.mubr.bf16.mxu0 0
          %540 = vmatmul.mubr.bf16.gmra.mrb[0].mxu0 %v383
          %v541 = vpop.f32.mrb[0].mxu0
          %v542 = vadd.f32 0.0, %v541
          %v543 = vpop.f32.mrb[0].mxu0
          %v544 = vadd.f32 0.0, %v543
          %v545 = vpop.f32.mrb[0].mxu0
          %v546 = vpop.f32.mrb[0].mxu0
          %547 = vdwg.mxu0
          %548 = vmatprep.subr.bf16.mxu0 %v411
          %549 = vmatpush1.bf16.msra.mxu0 %v408
          %550 = vmatprep.subr.bf16.mxu0 0
          %551 = vmatpush1.bf16.msra.mxu0 0
          %552 = vmatprep.subr.bf16.mxu0 0
          %553 = vmatpush1.bf16.msra.mxu0 0
          %554 = vmatprep.subr.bf16.mxu0 0
          %555 = vmatpush1.bf16.msra.mxu0 0
          %556 = vmatprep.subr.bf16.mxu0 0
          %557 = vmatpush1.bf16.msra.mxu0 0
          %558 = vmatprep.subr.bf16.mxu0 0
          %559 = vmatpush1.bf16.msra.mxu0 0
          %560 = vmatprep.subr.bf16.mxu0 0
          %561 = vmatpush1.bf16.msra.mxu0 0
          %562 = vmatprep.subr.bf16.mxu0 0
          %563 = vmatpush1.bf16.msra.mxu0 0
          %564 = vmatprep.subr.bf16.mxu0 0
          %565 = vmatpush1.bf16.msra.mxu0 0
          %566 = vmatprep.subr.bf16.mxu0 0
          %567 = vmatpush1.bf16.msra.mxu0 0
          %568 = vmatprep.subr.bf16.mxu0 0
          %569 = vmatpush1.bf16.msra.mxu0 0
          %570 = vmatprep.subr.bf16.mxu0 0
          %571 = vmatpush1.bf16.msra.mxu0 0
          %572 = vmatprep.subr.bf16.mxu0 0
          %573 = vmatpush1.bf16.msra.mxu0 0
          %574 = vmatprep.subr.bf16.mxu0 0
          %575 = vmatpush1.bf16.msra.mxu0 0
          %576 = vmatprep.subr.bf16.mxu0 0
          %577 = vmatpush1.bf16.msra.mxu0 0
          %578 = vmatprep.subr.bf16.mxu0 0
          %579 = vmatpush1.bf16.msra.mxu0 0
          %580 = vmatprep.mubr.bf16.mxu0 0
          %581 = vmatmul.mubr.bf16.gmra.mrb[0].mxu0 %v383
          %v582 = vpop.f32.mrb[0].mxu0
          %v583 = vadd.f32 0.0, %v582
          %v584 = vpop.f32.mrb[0].mxu0
          %v585 = vadd.f32 0.0, %v584
          %v586 = vpop.f32.mrb[0].mxu0
          %v587 = vpop.f32.mrb[0].mxu0
          %588 = vdwg.mxu0
          %589 = vmatprep.subr.bf16.mxu0 %v417
          %590 = vmatpush1.bf16.msra.mxu0 %v414
          %591 = vmatprep.subr.bf16.mxu0 0
          %592 = vmatpush1.bf16.msra.mxu0 0
          %593 = vmatprep.subr.bf16.mxu0 0
          %594 = vmatpush1.bf16.msra.mxu0 0
          %595 = vmatprep.subr.bf16.mxu0 0
          %596 = vmatpush1.bf16.msra.mxu0 0
          %597 = vmatprep.subr.bf16.mxu0 0
          %598 = vmatpush1.bf16.msra.mxu0 0
          %599 = vmatprep.subr.bf16.mxu0 0
          %600 = vmatpush1.bf16.msra.mxu0 0
          %601 = vmatprep.subr.bf16.mxu0 0
          %602 = vmatpush1.bf16.msra.mxu0 0
          %603 = vmatprep.subr.bf16.mxu0 0
          %604 = vmatpush1.bf16.msra.mxu0 0
          %605 = vmatprep.subr.bf16.mxu0 0
          %606 = vmatpush1.bf16.msra.mxu0 0
          %607 = vmatprep.subr.bf16.mxu0 0
          %608 = vmatpush1.bf16.msra.mxu0 0
          %609 = vmatprep.subr.bf16.mxu0 0
          %610 = vmatpush1.bf16.msra.mxu0 0
          %611 = vmatprep.subr.bf16.mxu0 0
          %612 = vmatpush1.bf16.msra.mxu0 0
          %613 = vmatprep.subr.bf16.mxu0 0
          %614 = vmatpush1.bf16.msra.mxu0 0
          %615 = vmatprep.subr.bf16.mxu0 0
          %616 = vmatpush1.bf16.msra.mxu0 0
          %617 = vmatprep.subr.bf16.mxu0 0
          %618 = vmatpush1.bf16.msra.mxu0 0
          %619 = vmatprep.subr.bf16.mxu0 0
          %620 = vmatpush1.bf16.msra.mxu0 0
          %621 = vmatprep.mubr.bf16.mxu0 0
          %622 = vmatmul.mubr.bf16.gmra.mrb[0].mxu0 %v383
          %v623 = vpop.f32.mrb[0].mxu0
          %v624 = vadd.f32 0.0, %v623
          %v625 = vpop.f32.mrb[0].mxu0
          %v626 = vadd.f32 0.0, %v625
          %v627 = vpop.f32.mrb[0].mxu0
          %v628 = vpop.f32.mrb[0].mxu0
          %629 = vdwg.mxu0
          %630 = vmatprep.subr.bf16.mxu0 %v423
          %631 = vmatpush1.bf16.msra.mxu0 %v420
          %632 = vmatprep.subr.bf16.mxu0 0
          %633 = vmatpush1.bf16.msra.mxu0 0
          %634 = vmatprep.subr.bf16.mxu0 0
          %635 = vmatpush1.bf16.msra.mxu0 0
          %636 = vmatprep.subr.bf16.mxu0 0
          %637 = vmatpush1.bf16.msra.mxu0 0
          %638 = vmatprep.subr.bf16.mxu0 0
          %639 = vmatpush1.bf16.msra.mxu0 0
          %640 = vmatprep.subr.bf16.mxu0 0
          %641 = vmatpush1.bf16.msra.mxu0 0
          %642 = vmatprep.subr.bf16.mxu0 0
          %643 = vmatpush1.bf16.msra.mxu0 0
          %644 = vmatprep.subr.bf16.mxu0 0
          %645 = vmatpush1.bf16.msra.mxu0 0
          %646 = vmatprep.subr.bf16.mxu0 0
          %647 = vmatpush1.bf16.msra.mxu0 0
          %648 = vmatprep.subr.bf16.mxu0 0
          %649 = vmatpush1.bf16.msra.mxu0 0
          %650 = vmatprep.subr.bf16.mxu0 0
          %651 = vmatpush1.bf16.msra.mxu0 0
          %652 = vmatprep.subr.bf16.mxu0 0
          %653 = vmatpush1.bf16.msra.mxu0 0
          %654 = vmatprep.subr.bf16.mxu0 0
          %655 = vmatpush1.bf16.msra.mxu0 0
          %656 = vmatprep.subr.bf16.mxu0 0
          %657 = vmatpush1.bf16.msra.mxu0 0
          %658 = vmatprep.subr.bf16.mxu0 0
          %659 = vmatpush1.bf16.msra.mxu0 0
          %660 = vmatprep.subr.bf16.mxu0 0
          %661 = vmatpush1.bf16.msra.mxu0 0
          %662 = vmatprep.mubr.bf16.mxu0 0
          %663 = vmatmul.mubr.bf16.gmra.mrb[0].mxu0 %v383
          %v664 = vpop.f32.mrb[0].mxu0
          %v665 = vadd.f32 0.0, %v664
          %v666 = vpop.f32.mrb[0].mxu0
          %v667 = vadd.f32 0.0, %v666
          %v668 = vpop.f32.mrb[0].mxu0
          %v669 = vpop.f32.mrb[0].mxu0
          %670 = vdwg.mxu0
          %v683 = vunpack.c.l.b16 %v285
          %v684 = vunpack.c.h.b16 %v285
          %v685 = vunpack.c.l.b16 %v286
          %v686 = vunpack.c.h.b16 %v286
          %v687 = vunpack.c.l.b16 %v287
          %v688 = vunpack.c.h.b16 %v287
          %v689 = vunpack.c.l.b16 %v288
          %v690 = vunpack.c.h.b16 %v288
          %v691 = vunpack.c.l.b16 %v289
          %v692 = vunpack.c.h.b16 %v289
          %v693 = vunpack.c.l.b16 %v290
          %v694 = vunpack.c.h.b16 %v290
          %v695 = vunpack.c.l.b16 %v291
          %v696 = vunpack.c.h.b16 %v291
          %v697 = vunpack.c.l.b16 %v292
          %v698 = vunpack.c.h.b16 %v292
          %v699 = vunpack.c.l.b16 %v293
          %v700 = vunpack.c.h.b16 %v293
          %v701 = vunpack.c.l.b16 %v294
          %v702 = vunpack.c.h.b16 %v294
          %v703 = vunpack.c.l.b16 %v295
          %v704 = vunpack.c.h.b16 %v295
          %v705 = vunpack.c.l.b16 %v296
          %v706 = vunpack.c.h.b16 %v296
          %v707 = vpack.c.b16 %v695, %v683
          %v708 = vpack.c.b16 %v696, %v684
          %v709 = vpack.c.b16 %v697, %v685
          %v710 = vpack.c.b16 %v698, %v686
          %v711 = vpack.c.b16 %v699, %v687
          %v712 = vpack.c.b16 %v700, %v688
          %v713 = vpack.c.b16 %v701, %v689
          %v714 = vpack.c.b16 %v702, %v690
          %v715 = vpack.c.b16 %v703, %v691
          %v716 = vpack.c.b16 %v704, %v692
          %v717 = vpack.c.b16 %v705, %v693
          %v718 = vpack.c.b16 %v706, %v694
          %v720 = vsel %vm381, %v284, 0
          %v723 = vand.u32 %v707, %v388
          %v726 = vand.u32 %v708, %v388
          %v729 = vand.u32 %v709, %v388
          %v732 = vand.u32 %v710, %v388
          %v735 = vand.u32 %v711, %v388
          %v738 = vand.u32 %v712, %v388
          %v741 = vand.u32 %v713, %v388
          %v744 = vand.u32 %v714, %v388
          %v747 = vand.u32 %v715, %v388
          %v750 = vand.u32 %v716, %v388
          %v753 = vand.u32 %v717, %v388
          %v756 = vand.u32 %v718, %v388
          %758 = vmatprep.subr.bf16.mxu0 %v726
          %759 = vmatpush1.bf16.msra.mxu0 %v723
          %760 = vmatprep.subr.bf16.mxu0 0
          %761 = vmatpush1.bf16.msra.mxu0 0
          %762 = vmatprep.subr.bf16.mxu0 0
          %763 = vmatpush1.bf16.msra.mxu0 0
          %764 = vmatprep.subr.bf16.mxu0 0
          %765 = vmatpush1.bf16.msra.mxu0 0
          %766 = vmatprep.subr.bf16.mxu0 0
          %767 = vmatpush1.bf16.msra.mxu0 0
          %768 = vmatprep.subr.bf16.mxu0 0
          %769 = vmatpush1.bf16.msra.mxu0 0
          %770 = vmatprep.subr.bf16.mxu0 0
          %771 = vmatpush1.bf16.msra.mxu0 0
          %772 = vmatprep.subr.bf16.mxu0 0
          %773 = vmatpush1.bf16.msra.mxu0 0
          %774 = vmatprep.subr.bf16.mxu0 0
          %775 = vmatpush1.bf16.msra.mxu0 0
          %776 = vmatprep.subr.bf16.mxu0 0
          %777 = vmatpush1.bf16.msra.mxu0 0
          %778 = vmatprep.subr.bf16.mxu0 0
          %779 = vmatpush1.bf16.msra.mxu0 0
          %780 = vmatprep.subr.bf16.mxu0 0
          %781 = vmatpush1.bf16.msra.mxu0 0
          %782 = vmatprep.subr.bf16.mxu0 0
          %783 = vmatpush1.bf16.msra.mxu0 0
          %784 = vmatprep.subr.bf16.mxu0 0
          %785 = vmatpush1.bf16.msra.mxu0 0
          %786 = vmatprep.subr.bf16.mxu0 0
          %787 = vmatpush1.bf16.msra.mxu0 0
          %788 = vmatprep.subr.bf16.mxu0 0
          %789 = vmatpush1.bf16.msra.mxu0 0
          %790 = vmatprep.mubr.bf16.mxu0 0
          %791 = vmatmul.mubr.bf16.gmra.mrb[0].mxu0 %v720
          %v792 = vpop.f32.mrb[0].mxu0
          %v793 = vadd.f32 %v460, %v792
          %v794 = vpop.f32.mrb[0].mxu0
          %v795 = vadd.f32 %v462, %v794
          %v796 = vpop.f32.mrb[0].mxu0
          %v797 = vpop.f32.mrb[0].mxu0
          %798 = vdwg.mxu0
          %799 = vmatprep.subr.bf16.mxu0 %v732
          %800 = vmatpush1.bf16.msra.mxu0 %v729
          %801 = vmatprep.subr.bf16.mxu0 0
          %802 = vmatpush1.bf16.msra.mxu0 0
          %803 = vmatprep.subr.bf16.mxu0 0
          %804 = vmatpush1.bf16.msra.mxu0 0
          %805 = vmatprep.subr.bf16.mxu0 0
          %806 = vmatpush1.bf16.msra.mxu0 0
          %807 = vmatprep.subr.bf16.mxu0 0
          %808 = vmatpush1.bf16.msra.mxu0 0
          %809 = vmatprep.subr.bf16.mxu0 0
          %810 = vmatpush1.bf16.msra.mxu0 0
          %811 = vmatprep.subr.bf16.mxu0 0
          %812 = vmatpush1.bf16.msra.mxu0 0
          %813 = vmatprep.subr.bf16.mxu0 0
          %814 = vmatpush1.bf16.msra.mxu0 0
          %815 = vmatprep.subr.bf16.mxu0 0
          %816 = vmatpush1.bf16.msra.mxu0 0
          %817 = vmatprep.subr.bf16.mxu0 0
          %818 = vmatpush1.bf16.msra.mxu0 0
          %819 = vmatprep.subr.bf16.mxu0 0
          %820 = vmatpush1.bf16.msra.mxu0 0
          %821 = vmatprep.subr.bf16.mxu0 0
          %822 = vmatpush1.bf16.msra.mxu0 0
          %823 = vmatprep.subr.bf16.mxu0 0
          %824 = vmatpush1.bf16.msra.mxu0 0
          %825 = vmatprep.subr.bf16.mxu0 0
          %826 = vmatpush1.bf16.msra.mxu0 0
          %827 = vmatprep.subr.bf16.mxu0 0
          %828 = vmatpush1.bf16.msra.mxu0 0
          %829 = vmatprep.subr.bf16.mxu0 0
          %830 = vmatpush1.bf16.msra.mxu0 0
          %831 = vmatprep.mubr.bf16.mxu0 0
          %832 = vmatmul.mubr.bf16.gmra.mrb[0].mxu0 %v720
          %v833 = vpop.f32.mrb[0].mxu0
          %v834 = vadd.f32 %v501, %v833
          %v835 = vpop.f32.mrb[0].mxu0
          %v836 = vadd.f32 %v503, %v835
          %v837 = vpop.f32.mrb[0].mxu0
          %v838 = vpop.f32.mrb[0].mxu0
          %839 = vdwg.mxu0
          %840 = vmatprep.subr.bf16.mxu0 %v738
          %841 = vmatpush1.bf16.msra.mxu0 %v735
          %842 = vmatprep.subr.bf16.mxu0 0
          %843 = vmatpush1.bf16.msra.mxu0 0
          %844 = vmatprep.subr.bf16.mxu0 0
          %845 = vmatpush1.bf16.msra.mxu0 0
          %846 = vmatprep.subr.bf16.mxu0 0
          %847 = vmatpush1.bf16.msra.mxu0 0
          %848 = vmatprep.subr.bf16.mxu0 0
          %849 = vmatpush1.bf16.msra.mxu0 0
          %850 = vmatprep.subr.bf16.mxu0 0
          %851 = vmatpush1.bf16.msra.mxu0 0
          %852 = vmatprep.subr.bf16.mxu0 0
          %853 = vmatpush1.bf16.msra.mxu0 0
          %854 = vmatprep.subr.bf16.mxu0 0
          %855 = vmatpush1.bf16.msra.mxu0 0
          %856 = vmatprep.subr.bf16.mxu0 0
          %857 = vmatpush1.bf16.msra.mxu0 0
          %858 = vmatprep.subr.bf16.mxu0 0
          %859 = vmatpush1.bf16.msra.mxu0 0
          %860 = vmatprep.subr.bf16.mxu0 0
          %861 = vmatpush1.bf16.msra.mxu0 0
          %862 = vmatprep.subr.bf16.mxu0 0
          %863 = vmatpush1.bf16.msra.mxu0 0
          %864 = vmatprep.subr.bf16.mxu0 0
          %865 = vmatpush1.bf16.msra.mxu0 0
          %866 = vmatprep.subr.bf16.mxu0 0
          %867 = vmatpush1.bf16.msra.mxu0 0
          %868 = vmatprep.subr.bf16.mxu0 0
          %869 = vmatpush1.bf16.msra.mxu0 0
          %870 = vmatprep.subr.bf16.mxu0 0
          %871 = vmatpush1.bf16.msra.mxu0 0
          %872 = vmatprep.mubr.bf16.mxu0 0
          %873 = vmatmul.mubr.bf16.gmra.mrb[0].mxu0 %v720
          %v874 = vpop.f32.mrb[0].mxu0
          %v875 = vadd.f32 %v542, %v874
          %v876 = vpop.f32.mrb[0].mxu0
          %v877 = vadd.f32 %v544, %v876
          %v878 = vpop.f32.mrb[0].mxu0
          %v879 = vpop.f32.mrb[0].mxu0
          %880 = vdwg.mxu0
          %881 = vmatprep.subr.bf16.mxu0 %v744
          %882 = vmatpush1.bf16.msra.mxu0 %v741
          %883 = vmatprep.subr.bf16.mxu0 0
          %884 = vmatpush1.bf16.msra.mxu0 0
          %885 = vmatprep.subr.bf16.mxu0 0
          %886 = vmatpush1.bf16.msra.mxu0 0
          %887 = vmatprep.subr.bf16.mxu0 0
          %888 = vmatpush1.bf16.msra.mxu0 0
          %889 = vmatprep.subr.bf16.mxu0 0
          %890 = vmatpush1.bf16.msra.mxu0 0
          %891 = vmatprep.subr.bf16.mxu0 0
          %892 = vmatpush1.bf16.msra.mxu0 0
          %893 = vmatprep.subr.bf16.mxu0 0
          %894 = vmatpush1.bf16.msra.mxu0 0
          %895 = vmatprep.subr.bf16.mxu0 0
          %896 = vmatpush1.bf16.msra.mxu0 0
          %897 = vmatprep.subr.bf16.mxu0 0
          %898 = vmatpush1.bf16.msra.mxu0 0
          %899 = vmatprep.subr.bf16.mxu0 0
          %900 = vmatpush1.bf16.msra.mxu0 0
          %901 = vmatprep.subr.bf16.mxu0 0
          %902 = vmatpush1.bf16.msra.mxu0 0
          %903 = vmatprep.subr.bf16.mxu0 0
          %904 = vmatpush1.bf16.msra.mxu0 0
          %905 = vmatprep.subr.bf16.mxu0 0
          %906 = vmatpush1.bf16.msra.mxu0 0
          %907 = vmatprep.subr.bf16.mxu0 0
          %908 = vmatpush1.bf16.msra.mxu0 0
          %909 = vmatprep.subr.bf16.mxu0 0
          %910 = vmatpush1.bf16.msra.mxu0 0
          %911 = vmatprep.subr.bf16.mxu0 0
          %912 = vmatpush1.bf16.msra.mxu0 0
          %913 = vmatprep.mubr.bf16.mxu0 0
          %914 = vmatmul.mubr.bf16.gmra.mrb[0].mxu0 %v720
          %v915 = vpop.f32.mrb[0].mxu0
          %v916 = vadd.f32 %v583, %v915
          %v917 = vpop.f32.mrb[0].mxu0
          %v918 = vadd.f32 %v585, %v917
          %v919 = vpop.f32.mrb[0].mxu0
          %v920 = vpop.f32.mrb[0].mxu0
          %921 = vdwg.mxu0
          %922 = vmatprep.subr.bf16.mxu0 %v750
          %923 = vmatpush1.bf16.msra.mxu0 %v747
          %924 = vmatprep.subr.bf16.mxu0 0
          %925 = vmatpush1.bf16.msra.mxu0 0
          %926 = vmatprep.subr.bf16.mxu0 0
          %927 = vmatpush1.bf16.msra.mxu0 0
          %928 = vmatprep.subr.bf16.mxu0 0
          %929 = vmatpush1.bf16.msra.mxu0 0
          %930 = vmatprep.subr.bf16.mxu0 0
          %931 = vmatpush1.bf16.msra.mxu0 0
          %932 = vmatprep.subr.bf16.mxu0 0
          %933 = vmatpush1.bf16.msra.mxu0 0
          %934 = vmatprep.subr.bf16.mxu0 0
          %935 = vmatpush1.bf16.msra.mxu0 0
          %936 = vmatprep.subr.bf16.mxu0 0
          %937 = vmatpush1.bf16.msra.mxu0 0
          %938 = vmatprep.subr.bf16.mxu0 0
          %939 = vmatpush1.bf16.msra.mxu0 0
          %940 = vmatprep.subr.bf16.mxu0 0
          %941 = vmatpush1.bf16.msra.mxu0 0
          %942 = vmatprep.subr.bf16.mxu0 0
          %943 = vmatpush1.bf16.msra.mxu0 0
          %944 = vmatprep.subr.bf16.mxu0 0
          %945 = vmatpush1.bf16.msra.mxu0 0
          %946 = vmatprep.subr.bf16.mxu0 0
          %947 = vmatpush1.bf16.msra.mxu0 0
          %948 = vmatprep.subr.bf16.mxu0 0
          %949 = vmatpush1.bf16.msra.mxu0 0
          %950 = vmatprep.subr.bf16.mxu0 0
          %951 = vmatpush1.bf16.msra.mxu0 0
          %952 = vmatprep.subr.bf16.mxu0 0
          %953 = vmatpush1.bf16.msra.mxu0 0
          %954 = vmatprep.mubr.bf16.mxu0 0
          %955 = vmatmul.mubr.bf16.gmra.mrb[0].mxu0 %v720
          %v956 = vpop.f32.mrb[0].mxu0
          %v957 = vadd.f32 %v624, %v956
          %v958 = vpop.f32.mrb[0].mxu0
          %v959 = vadd.f32 %v626, %v958
          %v960 = vpop.f32.mrb[0].mxu0
          %v961 = vpop.f32.mrb[0].mxu0
          %962 = vdwg.mxu0
          %963 = vmatprep.subr.bf16.mxu0 %v756
          %964 = vmatpush1.bf16.msra.mxu0 %v753
          %965 = vmatprep.subr.bf16.mxu0 0
          %966 = vmatpush1.bf16.msra.mxu0 0
          %967 = vmatprep.subr.bf16.mxu0 0
          %968 = vmatpush1.bf16.msra.mxu0 0
          %969 = vmatprep.subr.bf16.mxu0 0
          %970 = vmatpush1.bf16.msra.mxu0 0
          %971 = vmatprep.subr.bf16.mxu0 0
          %972 = vmatpush1.bf16.msra.mxu0 0
          %973 = vmatprep.subr.bf16.mxu0 0
          %974 = vmatpush1.bf16.msra.mxu0 0
          %975 = vmatprep.subr.bf16.mxu0 0
          %976 = vmatpush1.bf16.msra.mxu0 0
          %977 = vmatprep.subr.bf16.mxu0 0
          %978 = vmatpush1.bf16.msra.mxu0 0
          %979 = vmatprep.subr.bf16.mxu0 0
          %980 = vmatpush1.bf16.msra.mxu0 0
          %981 = vmatprep.subr.bf16.mxu0 0
          %982 = vmatpush1.bf16.msra.mxu0 0
          %983 = vmatprep.subr.bf16.mxu0 0
          %984 = vmatpush1.bf16.msra.mxu0 0
          %985 = vmatprep.subr.bf16.mxu0 0
          %986 = vmatpush1.bf16.msra.mxu0 0
          %987 = vmatprep.subr.bf16.mxu0 0
          %988 = vmatpush1.bf16.msra.mxu0 0
          %989 = vmatprep.subr.bf16.mxu0 0
          %990 = vmatpush1.bf16.msra.mxu0 0
          %991 = vmatprep.subr.bf16.mxu0 0
          %992 = vmatpush1.bf16.msra.mxu0 0
          %993 = vmatprep.subr.bf16.mxu0 0
          %994 = vmatpush1.bf16.msra.mxu0 0
          %995 = vmatprep.mubr.bf16.mxu0 0
          %996 = vmatmul.mubr.bf16.gmra.mrb[0].mxu0 %v720
          %v997 = vpop.f32.mrb[0].mxu0
          %v998 = vadd.f32 %v665, %v997
          %v999 = vpop.f32.mrb[0].mxu0
          %v1000 = vadd.f32 %v667, %v999
          %v1001 = vpop.f32.mrb[0].mxu0
          %v1002 = vpop.f32.mrb[0].mxu0
          %1003 = vdwg.mxu0
          %1004 = vset.pattern.permute.xlu0 6
          %1005 = vperm.xlu0 %1004, %v255
          %v1006 = vpop.permute.xlu0 %1005
          %v1008 = vmul.f32 %v256, %v1006
          %1009 = vset.pattern.permute.xlu0 11
          %1010 = vperm.xlu0 %1009, %v255
          %v1011 = vpop.permute.xlu0 %1010
          %v1013 = vadd.f32 %v1011, %v1008
          %1014 = vset.pattern.permute.xlu0 7
          %1015 = vperm.xlu0 %1014, %v255
          %v1016 = vpop.permute.xlu0 %1015
          %v1018 = vmul.f32 %v269, %v1016
          %v1019 = vadd.f32 %v1013, %v1018
          %1020 = vset.pattern.permute.xlu0 8
          %1021 = vperm.xlu0 %1020, %v255
          %v1022 = vpop.permute.xlu0 %1021
          %v1024 = vmul.f32 %v277, %v1022
          %v1025 = vadd.f32 %v1019, %v1024
          %v1026 = vpack.c.bf16 %v1025, %v1025
          %s1027 = scalar_lea.vmem %s2, 192
          %v1028 = vld [vmem:[%s1027] sm:$0xff]
          %v1029 = vld [vmem:[%s1027 + $0x8] sm:$0xff]
          %v1030 = vld [vmem:[%s1027 + $0x10] sm:$0xff]
          %v1031 = vld [vmem:[%s1027 + $0x18] sm:$0xff]
          %v1032 = vld [vmem:[%s1027 + $0x20] sm:$0xff]
          %v1033 = vld [vmem:[%s1027 + $0x28] sm:$0xff]
          %v1034 = vld [vmem:[%s1027 + $0x30] sm:$0x33]
          %v1035 = vld [vmem:[%s1027 + $0x38] sm:$0x33]
          %v1036 = vld [vmem:[%s1027 + $0x40] sm:$0x33]
          %v1037 = vld [vmem:[%s1027 + $0x48] sm:$0x33]
          %v1038 = vld [vmem:[%s1027 + $0x50] sm:$0x33]
          %v1039 = vld [vmem:[%s1027 + $0x58] sm:$0x33]
          %v1052 = vunpack.c.l.b16 %v1028
          %v1053 = vunpack.c.h.b16 %v1028
          %v1054 = vunpack.c.l.b16 %v1029
          %v1055 = vunpack.c.h.b16 %v1029
          %v1056 = vunpack.c.l.b16 %v1030
          %v1057 = vunpack.c.h.b16 %v1030
          %v1058 = vunpack.c.l.b16 %v1031
          %v1059 = vunpack.c.h.b16 %v1031
          %v1060 = vunpack.c.l.b16 %v1032
          %v1061 = vunpack.c.h.b16 %v1032
          %v1062 = vunpack.c.l.b16 %v1033
          %v1063 = vunpack.c.h.b16 %v1033
          %v1064 = vunpack.c.l.b16 %v1034
          %v1065 = vunpack.c.h.b16 %v1034
          %v1066 = vunpack.c.l.b16 %v1035
          %v1067 = vunpack.c.h.b16 %v1035
          %v1068 = vunpack.c.l.b16 %v1036
          %v1069 = vunpack.c.h.b16 %v1036
          %v1070 = vunpack.c.l.b16 %v1037
          %v1071 = vunpack.c.h.b16 %v1037
          %v1072 = vunpack.c.l.b16 %v1038
          %v1073 = vunpack.c.h.b16 %v1038
          %v1074 = vunpack.c.l.b16 %v1039
          %v1075 = vunpack.c.h.b16 %v1039
          %v1076 = vpack.c.b16 %v1064, %v1052
          %v1077 = vpack.c.b16 %v1065, %v1053
          %v1078 = vpack.c.b16 %v1066, %v1054
          %v1079 = vpack.c.b16 %v1067, %v1055
          %v1080 = vpack.c.b16 %v1068, %v1056
          %v1081 = vpack.c.b16 %v1069, %v1057
          %v1082 = vpack.c.b16 %v1070, %v1058
          %v1083 = vpack.c.b16 %v1071, %v1059
          %v1084 = vpack.c.b16 %v1072, %v1060
          %v1085 = vpack.c.b16 %v1073, %v1061
          %v1086 = vpack.c.b16 %v1074, %v1062
          %v1087 = vpack.c.b16 %v1075, %v1063
          %v1089 = vsel %vm381, %v1026, 0
          %v1092 = vand.u32 %v1076, %v388
          %v1095 = vand.u32 %v1077, %v388
          %v1098 = vand.u32 %v1078, %v388
          %v1101 = vand.u32 %v1079, %v388
          %v1104 = vand.u32 %v1080, %v388
          %v1107 = vand.u32 %v1081, %v388
          %v1110 = vand.u32 %v1082, %v388
          %v1113 = vand.u32 %v1083, %v388
          %v1116 = vand.u32 %v1084, %v388
          %v1119 = vand.u32 %v1085, %v388
          %v1122 = vand.u32 %v1086, %v388
          %v1125 = vand.u32 %v1087, %v388
          %1127 = vmatprep.subr.bf16.mxu0 %v1095
          %1128 = vmatpush1.bf16.msra.mxu0 %v1092
          %1129 = vmatprep.subr.bf16.mxu0 0
          %1130 = vmatpush1.bf16.msra.mxu0 0
          %1131 = vmatprep.subr.bf16.mxu0 0
          %1132 = vmatpush1.bf16.msra.mxu0 0
          %1133 = vmatprep.subr.bf16.mxu0 0
          %1134 = vmatpush1.bf16.msra.mxu0 0
          %1135 = vmatprep.subr.bf16.mxu0 0
          %1136 = vmatpush1.bf16.msra.mxu0 0
          %1137 = vmatprep.subr.bf16.mxu0 0
          %1138 = vmatpush1.bf16.msra.mxu0 0
          %1139 = vmatprep.subr.bf16.mxu0 0
          %1140 = vmatpush1.bf16.msra.mxu0 0
          %1141 = vmatprep.subr.bf16.mxu0 0
          %1142 = vmatpush1.bf16.msra.mxu0 0
          %1143 = vmatprep.subr.bf16.mxu0 0
          %1144 = vmatpush1.bf16.msra.mxu0 0
          %1145 = vmatprep.subr.bf16.mxu0 0
          %1146 = vmatpush1.bf16.msra.mxu0 0
          %1147 = vmatprep.subr.bf16.mxu0 0
          %1148 = vmatpush1.bf16.msra.mxu0 0
          %1149 = vmatprep.subr.bf16.mxu0 0
          %1150 = vmatpush1.bf16.msra.mxu0 0
          %1151 = vmatprep.subr.bf16.mxu0 0
          %1152 = vmatpush1.bf16.msra.mxu0 0
          %1153 = vmatprep.subr.bf16.mxu0 0
          %1154 = vmatpush1.bf16.msra.mxu0 0
          %1155 = vmatprep.subr.bf16.mxu0 0
          %1156 = vmatpush1.bf16.msra.mxu0 0
          %1157 = vmatprep.subr.bf16.mxu0 0
          %1158 = vmatpush1.bf16.msra.mxu0 0
          %1159 = vmatprep.mubr.bf16.mxu0 0
          %1160 = vmatmul.mubr.bf16.gmra.mrb[0].mxu0 %v1089
          %v1161 = vpop.f32.mrb[0].mxu0
          %v1162 = vadd.f32 0.0, %v1161
          %v1163 = vpop.f32.mrb[0].mxu0
          %v1164 = vadd.f32 0.0, %v1163
          %v1165 = vpop.f32.mrb[0].mxu0
          %v1166 = vpop.f32.mrb[0].mxu0
          %1167 = vdwg.mxu0
          %1168 = vmatprep.subr.bf16.mxu0 %v1101
          %1169 = vmatpush1.bf16.msra.mxu0 %v1098
          %1170 = vmatprep.subr.bf16.mxu0 0
          %1171 = vmatpush1.bf16.msra.mxu0 0
          %1172 = vmatprep.subr.bf16.mxu0 0
          %1173 = vmatpush1.bf16.msra.mxu0 0
          %1174 = vmatprep.subr.bf16.mxu0 0
          %1175 = vmatpush1.bf16.msra.mxu0 0
          %1176 = vmatprep.subr.bf16.mxu0 0
          %1177 = vmatpush1.bf16.msra.mxu0 0
          %1178 = vmatprep.subr.bf16.mxu0 0
          %1179 = vmatpush1.bf16.msra.mxu0 0
          %1180 = vmatprep.subr.bf16.mxu0 0
          %1181 = vmatpush1.bf16.msra.mxu0 0
          %1182 = vmatprep.subr.bf16.mxu0 0
          %1183 = vmatpush1.bf16.msra.mxu0 0
          %1184 = vmatprep.subr.bf16.mxu0 0
          %1185 = vmatpush1.bf16.msra.mxu0 0
          %1186 = vmatprep.subr.bf16.mxu0 0
          %1187 = vmatpush1.bf16.msra.mxu0 0
          %1188 = vmatprep.subr.bf16.mxu0 0
          %1189 = vmatpush1.bf16.msra.mxu0 0
          %1190 = vmatprep.subr.bf16.mxu0 0
          %1191 = vmatpush1.bf16.msra.mxu0 0
          %1192 = vmatprep.subr.bf16.mxu0 0
          %1193 = vmatpush1.bf16.msra.mxu0 0
          %1194 = vmatprep.subr.bf16.mxu0 0
          %1195 = vmatpush1.bf16.msra.mxu0 0
          %1196 = vmatprep.subr.bf16.mxu0 0
          %1197 = vmatpush1.bf16.msra.mxu0 0
          %1198 = vmatprep.subr.bf16.mxu0 0
          %1199 = vmatpush1.bf16.msra.mxu0 0
          %1200 = vmatprep.mubr.bf16.mxu0 0
          %1201 = vmatmul.mubr.bf16.gmra.mrb[0].mxu0 %v1089
          %v1202 = vpop.f32.mrb[0].mxu0
          %v1203 = vadd.f32 0.0, %v1202
          %v1204 = vpop.f32.mrb[0].mxu0
          %v1205 = vadd.f32 0.0, %v1204
          %v1206 = vpop.f32.mrb[0].mxu0
          %v1207 = vpop.f32.mrb[0].mxu0
          %1208 = vdwg.mxu0
          %1209 = vmatprep.subr.bf16.mxu0 %v1107
          %1210 = vmatpush1.bf16.msra.mxu0 %v1104
          %1211 = vmatprep.subr.bf16.mxu0 0
          %1212 = vmatpush1.bf16.msra.mxu0 0
          %1213 = vmatprep.subr.bf16.mxu0 0
          %1214 = vmatpush1.bf16.msra.mxu0 0
          %1215 = vmatprep.subr.bf16.mxu0 0
          %1216 = vmatpush1.bf16.msra.mxu0 0
          %1217 = vmatprep.subr.bf16.mxu0 0
          %1218 = vmatpush1.bf16.msra.mxu0 0
          %1219 = vmatprep.subr.bf16.mxu0 0
          %1220 = vmatpush1.bf16.msra.mxu0 0
          %1221 = vmatprep.subr.bf16.mxu0 0
          %1222 = vmatpush1.bf16.msra.mxu0 0
          %1223 = vmatprep.subr.bf16.mxu0 0
          %1224 = vmatpush1.bf16.msra.mxu0 0
          %1225 = vmatprep.subr.bf16.mxu0 0
          %1226 = vmatpush1.bf16.msra.mxu0 0
          %1227 = vmatprep.subr.bf16.mxu0 0
          %1228 = vmatpush1.bf16.msra.mxu0 0
          %1229 = vmatprep.subr.bf16.mxu0 0
          %1230 = vmatpush1.bf16.msra.mxu0 0
          %1231 = vmatprep.subr.bf16.mxu0 0
          %1232 = vmatpush1.bf16.msra.mxu0 0
          %1233 = vmatprep.subr.bf16.mxu0 0
          %1234 = vmatpush1.bf16.msra.mxu0 0
          %1235 = vmatprep.subr.bf16.mxu0 0
          %1236 = vmatpush1.bf16.msra.mxu0 0
          %1237 = vmatprep.subr.bf16.mxu0 0
          %1238 = vmatpush1.bf16.msra.mxu0 0
          %1239 = vmatprep.subr.bf16.mxu0 0
          %1240 = vmatpush1.bf16.msra.mxu0 0
          %1241 = vmatprep.mubr.bf16.mxu0 0
          %1242 = vmatmul.mubr.bf16.gmra.mrb[0].mxu0 %v1089
          %v1243 = vpop.f32.mrb[0].mxu0
          %v1244 = vadd.f32 0.0, %v1243
          %v1245 = vpop.f32.mrb[0].mxu0
          %v1246 = vadd.f32 0.0, %v1245
          %v1247 = vpop.f32.mrb[0].mxu0
          %v1248 = vpop.f32.mrb[0].mxu0
          %1249 = vdwg.mxu0
          %1250 = vmatprep.subr.bf16.mxu0 %v1113
          %1251 = vmatpush1.bf16.msra.mxu0 %v1110
          %1252 = vmatprep.subr.bf16.mxu0 0
          %1253 = vmatpush1.bf16.msra.mxu0 0
          %1254 = vmatprep.subr.bf16.mxu0 0
          %1255 = vmatpush1.bf16.msra.mxu0 0
          %1256 = vmatprep.subr.bf16.mxu0 0
          %1257 = vmatpush1.bf16.msra.mxu0 0
          %1258 = vmatprep.subr.bf16.mxu0 0
          %1259 = vmatpush1.bf16.msra.mxu0 0
          %1260 = vmatprep.subr.bf16.mxu0 0
          %1261 = vmatpush1.bf16.msra.mxu0 0
          %1262 = vmatprep.subr.bf16.mxu0 0
          %1263 = vmatpush1.bf16.msra.mxu0 0
          %1264 = vmatprep.subr.bf16.mxu0 0
          %1265 = vmatpush1.bf16.msra.mxu0 0
          %1266 = vmatprep.subr.bf16.mxu0 0
          %1267 = vmatpush1.bf16.msra.mxu0 0
          %1268 = vmatprep.subr.bf16.mxu0 0
          %1269 = vmatpush1.bf16.msra.mxu0 0
          %1270 = vmatprep.subr.bf16.mxu0 0
          %1271 = vmatpush1.bf16.msra.mxu0 0
          %1272 = vmatprep.subr.bf16.mxu0 0
          %1273 = vmatpush1.bf16.msra.mxu0 0
          %1274 = vmatprep.subr.bf16.mxu0 0
          %1275 = vmatpush1.bf16.msra.mxu0 0
          %1276 = vmatprep.subr.bf16.mxu0 0
          %1277 = vmatpush1.bf16.msra.mxu0 0
          %1278 = vmatprep.subr.bf16.mxu0 0
          %1279 = vmatpush1.bf16.msra.mxu0 0
          %1280 = vmatprep.subr.bf16.mxu0 0
          %1281 = vmatpush1.bf16.msra.mxu0 0
          %1282 = vmatprep.mubr.bf16.mxu0 0
          %1283 = vmatmul.mubr.bf16.gmra.mrb[0].mxu0 %v1089
          %v1284 = vpop.f32.mrb[0].mxu0
          %v1285 = vadd.f32 0.0, %v1284
          %v1286 = vpop.f32.mrb[0].mxu0
          %v1287 = vadd.f32 0.0, %v1286
          %v1288 = vpop.f32.mrb[0].mxu0
          %v1289 = vpop.f32.mrb[0].mxu0
          %1290 = vdwg.mxu0
          %1291 = vmatprep.subr.bf16.mxu0 %v1119
          %1292 = vmatpush1.bf16.msra.mxu0 %v1116
          %1293 = vmatprep.subr.bf16.mxu0 0
          %1294 = vmatpush1.bf16.msra.mxu0 0
          %1295 = vmatprep.subr.bf16.mxu0 0
          %1296 = vmatpush1.bf16.msra.mxu0 0
          %1297 = vmatprep.subr.bf16.mxu0 0
          %1298 = vmatpush1.bf16.msra.mxu0 0
          %1299 = vmatprep.subr.bf16.mxu0 0
          %1300 = vmatpush1.bf16.msra.mxu0 0
          %1301 = vmatprep.subr.bf16.mxu0 0
          %1302 = vmatpush1.bf16.msra.mxu0 0
          %1303 = vmatprep.subr.bf16.mxu0 0
          %1304 = vmatpush1.bf16.msra.mxu0 0
          %1305 = vmatprep.subr.bf16.mxu0 0
          %1306 = vmatpush1.bf16.msra.mxu0 0
          %1307 = vmatprep.subr.bf16.mxu0 0
          %1308 = vmatpush1.bf16.msra.mxu0 0
          %1309 = vmatprep.subr.bf16.mxu0 0
          %1310 = vmatpush1.bf16.msra.mxu0 0
          %1311 = vmatprep.subr.bf16.mxu0 0
          %1312 = vmatpush1.bf16.msra.mxu0 0
          %1313 = vmatprep.subr.bf16.mxu0 0
          %1314 = vmatpush1.bf16.msra.mxu0 0
          %1315 = vmatprep.subr.bf16.mxu0 0
          %1316 = vmatpush1.bf16.msra.mxu0 0
          %1317 = vmatprep.subr.bf16.mxu0 0
          %1318 = vmatpush1.bf16.msra.mxu0 0
          %1319 = vmatprep.subr.bf16.mxu0 0
          %1320 = vmatpush1.bf16.msra.mxu0 0
          %1321 = vmatprep.subr.bf16.mxu0 0
          %1322 = vmatpush1.bf16.msra.mxu0 0
          %1323 = vmatprep.mubr.bf16.mxu0 0
          %1324 = vmatmul.mubr.bf16.gmra.mrb[0].mxu0 %v1089
          %v1325 = vpop.f32.mrb[0].mxu0
          %v1326 = vadd.f32 0.0, %v1325
          %v1327 = vpop.f32.mrb[0].mxu0
          %v1328 = vadd.f32 0.0, %v1327
          %v1329 = vpop.f32.mrb[0].mxu0
          %v1330 = vpop.f32.mrb[0].mxu0
          %1331 = vdwg.mxu0
          %1332 = vmatprep.subr.bf16.mxu0 %v1125
          %1333 = vmatpush1.bf16.msra.mxu0 %v1122
          %1334 = vmatprep.subr.bf16.mxu0 0
          %1335 = vmatpush1.bf16.msra.mxu0 0
          %1336 = vmatprep.subr.bf16.mxu0 0
          %1337 = vmatpush1.bf16.msra.mxu0 0
          %1338 = vmatprep.subr.bf16.mxu0 0
          %1339 = vmatpush1.bf16.msra.mxu0 0
          %1340 = vmatprep.subr.bf16.mxu0 0
          %1341 = vmatpush1.bf16.msra.mxu0 0
          %1342 = vmatprep.subr.bf16.mxu0 0
          %1343 = vmatpush1.bf16.msra.mxu0 0
          %1344 = vmatprep.subr.bf16.mxu0 0
          %1345 = vmatpush1.bf16.msra.mxu0 0
          %1346 = vmatprep.subr.bf16.mxu0 0
          %1347 = vmatpush1.bf16.msra.mxu0 0
          %1348 = vmatprep.subr.bf16.mxu0 0
          %1349 = vmatpush1.bf16.msra.mxu0 0
          %1350 = vmatprep.subr.bf16.mxu0 0
          %1351 = vmatpush1.bf16.msra.mxu0 0
          %1352 = vmatprep.subr.bf16.mxu0 0
          %1353 = vmatpush1.bf16.msra.mxu0 0
          %1354 = vmatprep.subr.bf16.mxu0 0
          %1355 = vmatpush1.bf16.msra.mxu0 0
          %1356 = vmatprep.subr.bf16.mxu0 0
          %1357 = vmatpush1.bf16.msra.mxu0 0
          %1358 = vmatprep.subr.bf16.mxu0 0
          %1359 = vmatpush1.bf16.msra.mxu0 0
          %1360 = vmatprep.subr.bf16.mxu0 0
          %1361 = vmatpush1.bf16.msra.mxu0 0
          %1362 = vmatprep.subr.bf16.mxu0 0
          %1363 = vmatpush1.bf16.msra.mxu0 0
          %1364 = vmatprep.mubr.bf16.mxu0 0
          %1365 = vmatmul.mubr.bf16.gmra.mrb[0].mxu0 %v1089
          %v1366 = vpop.f32.mrb[0].mxu0
          %v1367 = vadd.f32 0.0, %v1366
          %v1368 = vpop.f32.mrb[0].mxu0
          %v1369 = vadd.f32 0.0, %v1368
          %v1370 = vpop.f32.mrb[0].mxu0
          %v1371 = vpop.f32.mrb[0].mxu0
          %1372 = vdwg.mxu0
          %v1373 = vadd.f32 %v793, %v1162
          %v1374 = vadd.f32 %v795, %v1164
          %v1375 = vadd.f32 %v834, %v1203
          %v1376 = vadd.f32 %v836, %v1205
          %v1377 = vadd.f32 %v875, %v1244
          %v1378 = vadd.f32 %v877, %v1246
          %v1379 = vadd.f32 %v916, %v1285
          %v1380 = vadd.f32 %v918, %v1287
          %v1381 = vadd.f32 %v957, %v1326
          %v1382 = vadd.f32 %v959, %v1328
          %v1383 = vadd.f32 %v998, %v1367
          %v1384 = vadd.f32 %v1000, %v1369
          %v1385 = vpack.c.bf16 %v1373, %v1373
          %1386 = vst [vmem:[#allocation2] sm:$0xf] %v1385
          %v1387 = vpack.c.bf16 %v1377, %v1377
          %1388 = vst [vmem:[#allocation3] sm:$0xf] %v1387
          %v1389 = vpack.c.bf16 %v1381, %v1381
          %1390 = vst [vmem:[#allocation4] sm:$0xf] %v1389
          %v1391 = vpack.c.bf16 %v1374, %v1374
          %s1392 = scalar_lea.vmem [#allocation2], 4
          %1393 = vst [vmem:[%s1392] sm:$0xf] %v1391
          %v1394 = vpack.c.bf16 %v1378, %v1378
          %s1395 = scalar_lea.vmem [#allocation3], 4
          %1396 = vst [vmem:[%s1395] sm:$0xf] %v1394
          %v1397 = vpack.c.bf16 %v1382, %v1382
          %s1398 = scalar_lea.vmem [#allocation4], 4
          %1399 = vst [vmem:[%s1398] sm:$0xf] %v1397
          %v1400 = vpack.c.bf16 %v1375, %v1375
          %s1401 = scalar_lea.vmem [#allocation2], 8
          %1402 = vst [vmem:[%s1401] sm:$0xf] %v1400
          %v1403 = vpack.c.bf16 %v1379, %v1379
          %s1404 = scalar_lea.vmem [#allocation3], 8
          %1405 = vst [vmem:[%s1404] sm:$0xf] %v1403
          %v1406 = vpack.c.bf16 %v1383, %v1383
          %s1407 = scalar_lea.vmem [#allocation4], 8
          %1408 = vst [vmem:[%s1407] sm:$0xf] %v1406
          %v1409 = vpack.c.bf16 %v1376, %v1376
          %s1410 = scalar_lea.vmem [#allocation2], 12
          %1411 = vst [vmem:[%s1410] sm:$0xf] %v1409
          %v1412 = vpack.c.bf16 %v1380, %v1380
          %s1413 = scalar_lea.vmem [#allocation3], 12
          %1414 = vst [vmem:[%s1413] sm:$0xf] %v1412
          %v1415 = vpack.c.bf16 %v1384, %v1384
          %s1416 = scalar_lea.vmem [#allocation4], 12
          %1417 = vst [vmem:[%s1416] sm:$0xf] %v1415
        $region40: #{tpu_custom_call.1} parent=35 // pred_fallthru
          _
        %s1418 = smul.u32 %s28, 8
        %s1419 = sshra.s32 %s1418, 3
        %s1420 = sand.u32 %s1418, 7
        %s1421 = smul.addr %s1419, 4
        %s1422 = scalar_lea.vmem [#allocation2], %s1421
        %v1423 = vld [vmem:[%s1422] sm:$0xf]
        %v1424 = vld [vmem:[%s1422 + $0x4] sm:$0xf]
        %v1425 = vld [vmem:[%s1422 + $0x8] sm:$0xf]
        %v1426 = vld [vmem:[%s1422 + $0xc] sm:$0xf]
        %v1427 = vld [vmem:[#allocation3] sm:$0xf]
        %v1428 = vld [vmem:[#allocation3 + $0x4] sm:$0xf]
        %v1429 = vld [vmem:[#allocation3 + $0x8] sm:$0xf]
        %v1430 = vld [vmem:[#allocation3 + $0xc] sm:$0xf]
        %1431 = vmatprep.subr.bf16.mxu0 0
        %1432 = vmatpush1.bf16.xpose.msra.mxu0 %v1427
        %1433 = vmatprep.subr.bf16.mxu0 0
        %1434 = vmatpush1.bf16.xpose.msra.mxu0 0
        %1435 = vmatprep.subr.bf16.mxu0 0
        %1436 = vmatpush1.bf16.xpose.msra.mxu0 0
        %1437 = vmatprep.subr.bf16.mxu0 0
        %1438 = vmatpush1.bf16.xpose.msra.mxu0 0
        %1439 = vmatprep.subr.bf16.mxu0 0
        %1440 = vmatpush1.bf16.xpose.msra.mxu0 0
        %1441 = vmatprep.subr.bf16.mxu0 0
        %1442 = vmatpush1.bf16.xpose.msra.mxu0 0
        %1443 = vmatprep.subr.bf16.mxu0 0
        %1444 = vmatpush1.bf16.xpose.msra.mxu0 0
        %1445 = vmatprep.subr.bf16.mxu0 0
        %1446 = vmatpush1.bf16.xpose.msra.mxu0 0
        %1447 = vmatprep.subr.bf16.mxu0 0
        %1448 = vmatpush1.bf16.xpose.msra.mxu0 0
        %1449 = vmatprep.subr.bf16.mxu0 0
        %1450 = vmatpush1.bf16.xpose.msra.mxu0 0
        %1451 = vmatprep.subr.bf16.mxu0 0
        %1452 = vmatpush1.bf16.xpose.msra.mxu0 0
        %1453 = vmatprep.subr.bf16.mxu0 0
        %1454 = vmatpush1.bf16.xpose.msra.mxu0 0
        %1455 = vmatprep.subr.bf16.mxu0 0
        %1456 = vmatpush1.bf16.xpose.msra.mxu0 0
        %1457 = vmatprep.subr.bf16.mxu0 0
        %1458 = vmatpush1.bf16.xpose.msra.mxu0 0
        %1459 = vmatprep.subr.bf16.mxu0 0
        %1460 = vmatpush1.bf16.xpose.msra.mxu0 0
        %1461 = vmatprep.subr.bf16.mxu0 0
        %1462 = vmatpush1.bf16.xpose.msra.mxu0 0
        %1463 = vmatprep.mubr.bf16.mxu0 0
        %1464 = vmatmul.mubr.bf16.gmra.mrb[0].mxu0 %v1423
        %v1465 = vpop.f32.mrb[0].mxu0
        %v1466 = vadd.f32 0.0, %v1465
        %v1467 = vpop.f32.mrb[0].mxu0
        %v1468 = vpop.f32.mrb[0].mxu0
        %v1469 = vpop.f32.mrb[0].mxu0
        %1470 = vdwg.mxu0
        %1471 = vmatprep.subr.bf16.mxu0 0
        %1472 = vmatpush1.bf16.xpose.msra.mxu0 %v1428
        %1473 = vmatprep.subr.bf16.mxu0 0
        %1474 = vmatpush1.bf16.xpose.msra.mxu0 0
        %1475 = vmatprep.subr.bf16.mxu0 0
        %1476 = vmatpush1.bf16.xpose.msra.mxu0 0
        %1477 = vmatprep.subr.bf16.mxu0 0
        %1478 = vmatpush1.bf16.xpose.msra.mxu0 0
        %1479 = vmatprep.subr.bf16.mxu0 0
        %1480 = vmatpush1.bf16.xpose.msra.mxu0 0
        %1481 = vmatprep.subr.bf16.mxu0 0
        %1482 = vmatpush1.bf16.xpose.msra.mxu0 0
        %1483 = vmatprep.subr.bf16.mxu0 0
        %1484 = vmatpush1.bf16.xpose.msra.mxu0 0
        %1485 = vmatprep.subr.bf16.mxu0 0
        %1486 = vmatpush1.bf16.xpose.msra.mxu0 0
        %1487 = vmatprep.subr.bf16.mxu0 0
        %1488 = vmatpush1.bf16.xpose.msra.mxu0 0
        %1489 = vmatprep.subr.bf16.mxu0 0
        %1490 = vmatpush1.bf16.xpose.msra.mxu0 0
        %1491 = vmatprep.subr.bf16.mxu0 0
        %1492 = vmatpush1.bf16.xpose.msra.mxu0 0
        %1493 = vmatprep.subr.bf16.mxu0 0
        %1494 = vmatpush1.bf16.xpose.msra.mxu0 0
        %1495 = vmatprep.subr.bf16.mxu0 0
        %1496 = vmatpush1.bf16.xpose.msra.mxu0 0
        %1497 = vmatprep.subr.bf16.mxu0 0
        %1498 = vmatpush1.bf16.xpose.msra.mxu0 0
        %1499 = vmatprep.subr.bf16.mxu0 0
        %1500 = vmatpush1.bf16.xpose.msra.mxu0 0
        %1501 = vmatprep.subr.bf16.mxu0 0
        %1502 = vmatpush1.bf16.xpose.msra.mxu0 0
        %1503 = vmatprep.mubr.bf16.mxu0 0
        %1504 = vmatmul.mubr.bf16.gmra.mrb[0].mxu0 %v1424
        %v1505 = vpop.f32.mrb[0].mxu0
        %v1506 = vadd.f32 0.0, %v1505
        %v1507 = vpop.f32.mrb[0].mxu0
        %v1508 = vpop.f32.mrb[0].mxu0
        %v1509 = vpop.f32.mrb[0].mxu0
        %1510 = vdwg.mxu0
        %1511 = vmatprep.subr.bf16.mxu0 0
        %1512 = vmatpush1.bf16.xpose.msra.mxu0 %v1429
        %1513 = vmatprep.subr.bf16.mxu0 0
        %1514 = vmatpush1.bf16.xpose.msra.mxu0 0
        %1515 = vmatprep.subr.bf16.mxu0 0
        %1516 = vmatpush1.bf16.xpose.msra.mxu0 0
        %1517 = vmatprep.subr.bf16.mxu0 0
        %1518 = vmatpush1.bf16.xpose.msra.mxu0 0
        %1519 = vmatprep.subr.bf16.mxu0 0
        %1520 = vmatpush1.bf16.xpose.msra.mxu0 0
        %1521 = vmatprep.subr.bf16.mxu0 0
        %1522 = vmatpush1.bf16.xpose.msra.mxu0 0
        %1523 = vmatprep.subr.bf16.mxu0 0
        %1524 = vmatpush1.bf16.xpose.msra.mxu0 0
        %1525 = vmatprep.subr.bf16.mxu0 0
        %1526 = vmatpush1.bf16.xpose.msra.mxu0 0
        %1527 = vmatprep.subr.bf16.mxu0 0
        %1528 = vmatpush1.bf16.xpose.msra.mxu0 0
        %1529 = vmatprep.subr.bf16.mxu0 0
        %1530 = vmatpush1.bf16.xpose.msra.mxu0 0
        %1531 = vmatprep.subr.bf16.mxu0 0
        %1532 = vmatpush1.bf16.xpose.msra.mxu0 0
        %1533 = vmatprep.subr.bf16.mxu0 0
        %1534 = vmatpush1.bf16.xpose.msra.mxu0 0
        %1535 = vmatprep.subr.bf16.mxu0 0
        %1536 = vmatpush1.bf16.xpose.msra.mxu0 0
        %1537 = vmatprep.subr.bf16.mxu0 0
        %1538 = vmatpush1.bf16.xpose.msra.mxu0 0
        %1539 = vmatprep.subr.bf16.mxu0 0
        %1540 = vmatpush1.bf16.xpose.msra.mxu0 0
        %1541 = vmatprep.subr.bf16.mxu0 0
        %1542 = vmatpush1.bf16.xpose.msra.mxu0 0
        %1543 = vmatprep.mubr.bf16.mxu0 0
        %1544 = vmatmul.mubr.bf16.gmra.mrb[0].mxu0 %v1425
        %v1545 = vpop.f32.mrb[0].mxu0
        %v1546 = vadd.f32 0.0, %v1545
        %v1547 = vpop.f32.mrb[0].mxu0
        %v1548 = vpop.f32.mrb[0].mxu0
        %v1549 = vpop.f32.mrb[0].mxu0
        %1550 = vdwg.mxu0
        %1551 = vmatprep.subr.bf16.mxu0 0
        %1552 = vmatpush1.bf16.xpose.msra.mxu0 %v1430
        %1553 = vmatprep.subr.bf16.mxu0 0
        %1554 = vmatpush1.bf16.xpose.msra.mxu0 0
        %1555 = vmatprep.subr.bf16.mxu0 0
        %1556 = vmatpush1.bf16.xpose.msra.mxu0 0
        %1557 = vmatprep.subr.bf16.mxu0 0
        %1558 = vmatpush1.bf16.xpose.msra.mxu0 0
        %1559 = vmatprep.subr.bf16.mxu0 0
        %1560 = vmatpush1.bf16.xpose.msra.mxu0 0
        %1561 = vmatprep.subr.bf16.mxu0 0
        %1562 = vmatpush1.bf16.xpose.msra.mxu0 0
        %1563 = vmatprep.subr.bf16.mxu0 0
        %1564 = vmatpush1.bf16.xpose.msra.mxu0 0
        %1565 = vmatprep.subr.bf16.mxu0 0
        %1566 = vmatpush1.bf16.xpose.msra.mxu0 0
        %1567 = vmatprep.subr.bf16.mxu0 0
        %1568 = vmatpush1.bf16.xpose.msra.mxu0 0
        %1569 = vmatprep.subr.bf16.mxu0 0
        %1570 = vmatpush1.bf16.xpose.msra.mxu0 0
        %1571 = vmatprep.subr.bf16.mxu0 0
        %1572 = vmatpush1.bf16.xpose.msra.mxu0 0
        %1573 = vmatprep.subr.bf16.mxu0 0
        %1574 = vmatpush1.bf16.xpose.msra.mxu0 0
        %1575 = vmatprep.subr.bf16.mxu0 0
        %1576 = vmatpush1.bf16.xpose.msra.mxu0 0
        %1577 = vmatprep.subr.bf16.mxu0 0
        %1578 = vmatpush1.bf16.xpose.msra.mxu0 0
        %1579 = vmatprep.subr.bf16.mxu0 0
        %1580 = vmatpush1.bf16.xpose.msra.mxu0 0
        %1581 = vmatprep.subr.bf16.mxu0 0
        %1582 = vmatpush1.bf16.xpose.msra.mxu0 0
        %1583 = vmatprep.mubr.bf16.mxu0 0
        %1584 = vmatmul.mubr.bf16.gmra.mrb[0].mxu0 %v1426
        %v1585 = vpop.f32.mrb[0].mxu0
        %v1586 = vadd.f32 0.0, %v1585
        %v1587 = vpop.f32.mrb[0].mxu0
        %v1588 = vpop.f32.mrb[0].mxu0
        %v1589 = vpop.f32.mrb[0].mxu0
        %1590 = vdwg.mxu0
        %v1591 = vlaneseq
        %v1592 = vshrl.u32 %v1591, 7
        %v1593 = vstv %s1418
        %v1594 = vadd.s32 %v1593, %v1592
        %v1595 = vlaneseq
        %v1596 = vand.u32 %v1595, 127
        %vm1597 = vcmp.gt.s32.totalorder %v1596, %v1594
        %v1598 = vsel %vm1597, 1, 0
        %vm1599 = vcmp.eq.s32.totalorder %v1598, 1
        %v1600 = vsel %vm1599, -inf, %v1466
        %v1601 = vsel %vm1599, -inf, %v1506
        %v1602 = vsel %vm1599, -inf, %v1546
        %v1603 = vsel %vm1599, -inf, %v1586
        %vm1604 = vcmask 64512
        %v1605 = vsel %vm1604, %v1600, -inf
        %1606 = vmax.xlane.f32.xlu0 %v1605
        %v1607 = vpop.xlane.xlu0 %1606
        %v1608 = vsel %vm1604, %v1601, -inf
        %1609 = vmax.xlane.f32.xlu0 %v1608
        %v1610 = vpop.xlane.xlu0 %1609
        %v1611 = vsel %vm1604, %v1602, -inf
        %1612 = vmax.xlane.f32.xlu0 %v1611
        %v1613 = vpop.xlane.xlu0 %1612
        %v1614 = vsel %vm1604, %v1603, -inf
        %1615 = vmax.xlane.f32.xlu0 %v1614
        %v1616 = vpop.xlane.xlu0 %1615
        %v1617 = vsub.f32 %v1600, %v1607
        %v1618 = vsub.f32 %v1601, %v1610
        %v1619 = vsub.f32 %v1602, %v1613
        %v1620 = vsub.f32 %v1603, %v1616
        %v1621 = vmul.f32 %v1617, 1.442695
        %v1622 = vpow.pop %v1621
        %v1623 = vmul.f32 %v1618, 1.442695
        %v1624 = vpow.pop %v1623
        %v1625 = vmul.f32 %v1619, 1.442695
        %v1626 = vpow.pop %v1625
        %v1627 = vmul.f32 %v1620, 1.442695
        %v1628 = vpow.pop %v1627
        %v1629 = vsel %vm1604, %v1622, 0.0
        %1630 = vadd.xlane.f32.xlu0 %v1629
        %v1631 = vpop.xlane.xlu0 %1630
        %v1632 = vsel %vm1604, %v1624, 0.0
        %1633 = vadd.xlane.f32.xlu0 %v1632
        %v1634 = vpop.xlane.xlu0 %1633
        %v1635 = vsel %vm1604, %v1626, 0.0
        %1636 = vadd.xlane.f32.xlu0 %v1635
        %v1637 = vpop.xlane.xlu0 %1636
        %v1638 = vsel %vm1604, %v1628, 0.0
        %1639 = vadd.xlane.f32.xlu0 %v1638
        %v1640 = vpop.xlane.xlu0 %1639
        %v1641 = vrcp.pop %v1631
        %v1642 = vrcp.pop %v1634
        %v1643 = vrcp.pop %v1637
        %v1644 = vrcp.pop %v1640
        %v1645 = vmul.f32 %v1622, %v1641
        %v1646 = vmul.f32 %v1624, %v1642
        %v1647 = vmul.f32 %v1626, %v1643
        %v1648 = vmul.f32 %v1628, %v1644
        %1649 = vst.msk [vmem:[%s244] sm:$0xff] %vm1604, %v1645
        %1650 = vst.msk [vmem:[%s244 + $0x8] sm:$0xff] %vm1604, %v1646
        %1651 = vst.msk [vmem:[%s244 + $0x10] sm:$0xff] %vm1604, %v1647
        %1652 = vst.msk [vmem:[%s244 + $0x18] sm:$0xff] %vm1604, %v1648
        %v1653 = vpack.c.bf16 %v1645, %v1645
        %v1654 = vld [vmem:[#allocation4] sm:$0xf]
        %v1656 = vsel %vm1604, %v1653, 0
        %vm1658 = vcmask 1043456
        %v1660 = vsel %vm1658, %v1654, 0
        %1662 = vmatprep.subr.bf16.mxu0 0
        %1663 = vmatpush1.bf16.msra.mxu0 %v1660
        %1664 = vmatprep.subr.bf16.mxu0 0
        %1665 = vmatpush1.bf16.msra.mxu0 0
        %1666 = vmatprep.subr.bf16.mxu0 0
        %1667 = vmatpush1.bf16.msra.mxu0 0
        %1668 = vmatprep.subr.bf16.mxu0 0
        %1669 = vmatpush1.bf16.msra.mxu0 0
        %1670 = vmatprep.subr.bf16.mxu0 0
        %1671 = vmatpush1.bf16.msra.mxu0 0
        %1672 = vmatprep.subr.bf16.mxu0 0
        %1673 = vmatpush1.bf16.msra.mxu0 0
        %1674 = vmatprep.subr.bf16.mxu0 0
        %1675 = vmatpush1.bf16.msra.mxu0 0
        %1676 = vmatprep.subr.bf16.mxu0 0
        %1677 = vmatpush1.bf16.msra.mxu0 0
        %1678 = vmatprep.subr.bf16.mxu0 0
        %1679 = vmatpush1.bf16.msra.mxu0 0
        %1680 = vmatprep.subr.bf16.mxu0 0
        %1681 = vmatpush1.bf16.msra.mxu0 0
        %1682 = vmatprep.subr.bf16.mxu0 0
        %1683 = vmatpush1.bf16.msra.mxu0 0
        %1684 = vmatprep.subr.bf16.mxu0 0
        %1685 = vmatpush1.bf16.msra.mxu0 0
        %1686 = vmatprep.subr.bf16.mxu0 0
        %1687 = vmatpush1.bf16.msra.mxu0 0
        %1688 = vmatprep.subr.bf16.mxu0 0
        %1689 = vmatpush1.bf16.msra.mxu0 0
        %1690 = vmatprep.subr.bf16.mxu0 0
        %1691 = vmatpush1.bf16.msra.mxu0 0
        %1692 = vmatprep.subr.bf16.mxu0 0
        %1693 = vmatpush1.bf16.msra.mxu0 0
        %1694 = vmatprep.mubr.bf16.mxu0 0
        %1695 = vmatmul.mubr.bf16.gmra.mrb[0].mxu0 %v1656
        %v1696 = vpop.f32.mrb[0].mxu0
        %v1697 = vadd.f32 0.0, %v1696
        %v1698 = vpop.f32.mrb[0].mxu0
        %v1699 = vpop.f32.mrb[0].mxu0
        %v1700 = vpop.f32.mrb[0].mxu0
        %1701 = vdwg.mxu0
        %v1702 = vpack.c.bf16 %v1646, %v1646
        %s1703 = scalar_lea.vmem [#allocation4], 4
        %v1704 = vld [vmem:[%s1703] sm:$0xf]
        %v1706 = vsel %vm1604, %v1702, 0
        %v1709 = vsel %vm1658, %v1704, 0
        %1711 = vmatprep.subr.bf16.mxu0 0
        %1712 = vmatpush1.bf16.msra.mxu0 %v1709
        %1713 = vmatprep.subr.bf16.mxu0 0
        %1714 = vmatpush1.bf16.msra.mxu0 0
        %1715 = vmatprep.subr.bf16.mxu0 0
        %1716 = vmatpush1.bf16.msra.mxu0 0
        %1717 = vmatprep.subr.bf16.mxu0 0
        %1718 = vmatpush1.bf16.msra.mxu0 0
        %1719 = vmatprep.subr.bf16.mxu0 0
        %1720 = vmatpush1.bf16.msra.mxu0 0
        %1721 = vmatprep.subr.bf16.mxu0 0
        %1722 = vmatpush1.bf16.msra.mxu0 0
        %1723 = vmatprep.subr.bf16.mxu0 0
        %1724 = vmatpush1.bf16.msra.mxu0 0
        %1725 = vmatprep.subr.bf16.mxu0 0
        %1726 = vmatpush1.bf16.msra.mxu0 0
        %1727 = vmatprep.subr.bf16.mxu0 0
        %1728 = vmatpush1.bf16.msra.mxu0 0
        %1729 = vmatprep.subr.bf16.mxu0 0
        %1730 = vmatpush1.bf16.msra.mxu0 0
        %1731 = vmatprep.subr.bf16.mxu0 0
        %1732 = vmatpush1.bf16.msra.mxu0 0
        %1733 = vmatprep.subr.bf16.mxu0 0
        %1734 = vmatpush1.bf16.msra.mxu0 0
        %1735 = vmatprep.subr.bf16.mxu0 0
        %1736 = vmatpush1.bf16.msra.mxu0 0
        %1737 = vmatprep.subr.bf16.mxu0 0
        %1738 = vmatpush1.bf16.msra.mxu0 0
        %1739 = vmatprep.subr.bf16.mxu0 0
        %1740 = vmatpush1.bf16.msra.mxu0 0
        %1741 = vmatprep.subr.bf16.mxu0 0
        %1742 = vmatpush1.bf16.msra.mxu0 0
        %1743 = vmatprep.mubr.bf16.mxu0 0
        %1744 = vmatmul.mubr.bf16.gmra.mrb[0].mxu0 %v1706
        %v1745 = vpop.f32.mrb[0].mxu0
        %v1746 = vadd.f32 0.0, %v1745
        %v1747 = vpop.f32.mrb[0].mxu0
        %v1748 = vpop.f32.mrb[0].mxu0
        %v1749 = vpop.f32.mrb[0].mxu0
        %1750 = vdwg.mxu0
        %v1751 = vpack.c.bf16 %v1647, %v1647
        %s1752 = scalar_lea.vmem [#allocation4], 8
        %v1753 = vld [vmem:[%s1752] sm:$0xf]
        %v1755 = vsel %vm1604, %v1751, 0
        %v1758 = vsel %vm1658, %v1753, 0
        %1760 = vmatprep.subr.bf16.mxu0 0
        %1761 = vmatpush1.bf16.msra.mxu0 %v1758
        %1762 = vmatprep.subr.bf16.mxu0 0
        %1763 = vmatpush1.bf16.msra.mxu0 0
        %1764 = vmatprep.subr.bf16.mxu0 0
        %1765 = vmatpush1.bf16.msra.mxu0 0
        %1766 = vmatprep.subr.bf16.mxu0 0
        %1767 = vmatpush1.bf16.msra.mxu0 0
        %1768 = vmatprep.subr.bf16.mxu0 0
        %1769 = vmatpush1.bf16.msra.mxu0 0
        %1770 = vmatprep.subr.bf16.mxu0 0
        %1771 = vmatpush1.bf16.msra.mxu0 0
        %1772 = vmatprep.subr.bf16.mxu0 0
        %1773 = vmatpush1.bf16.msra.mxu0 0
        %1774 = vmatprep.subr.bf16.mxu0 0
        %1775 = vmatpush1.bf16.msra.mxu0 0
        %1776 = vmatprep.subr.bf16.mxu0 0
        %1777 = vmatpush1.bf16.msra.mxu0 0
        %1778 = vmatprep.subr.bf16.mxu0 0
        %1779 = vmatpush1.bf16.msra.mxu0 0
        %1780 = vmatprep.subr.bf16.mxu0 0
        %1781 = vmatpush1.bf16.msra.mxu0 0
        %1782 = vmatprep.subr.bf16.mxu0 0
        %1783 = vmatpush1.bf16.msra.mxu0 0
        %1784 = vmatprep.subr.bf16.mxu0 0
        %1785 = vmatpush1.bf16.msra.mxu0 0
        %1786 = vmatprep.subr.bf16.mxu0 0
        %1787 = vmatpush1.bf16.msra.mxu0 0
        %1788 = vmatprep.subr.bf16.mxu0 0
        %1789 = vmatpush1.bf16.msra.mxu0 0
        %1790 = vmatprep.subr.bf16.mxu0 0
        %1791 = vmatpush1.bf16.msra.mxu0 0
        %1792 = vmatprep.mubr.bf16.mxu0 0
        %1793 = vmatmul.mubr.bf16.gmra.mrb[0].mxu0 %v1755
        %v1794 = vpop.f32.mrb[0].mxu0
        %v1795 = vadd.f32 0.0, %v1794
        %v1796 = vpop.f32.mrb[0].mxu0
        %v1797 = vpop.f32.mrb[0].mxu0
        %v1798 = vpop.f32.mrb[0].mxu0
        %1799 = vdwg.mxu0
        %v1800 = vpack.c.bf16 %v1648, %v1648
        %s1801 = scalar_lea.vmem [#allocation4], 12
        %v1802 = vld [vmem:[%s1801] sm:$0xf]
        %v1804 = vsel %vm1604, %v1800, 0
        %v1807 = vsel %vm1658, %v1802, 0
        %1809 = vmatprep.subr.bf16.mxu0 0
        %1810 = vmatpush1.bf16.msra.mxu0 %v1807
        %1811 = vmatprep.subr.bf16.mxu0 0
        %1812 = vmatpush1.bf16.msra.mxu0 0
        %1813 = vmatprep.subr.bf16.mxu0 0
        %1814 = vmatpush1.bf16.msra.mxu0 0
        %1815 = vmatprep.subr.bf16.mxu0 0
        %1816 = vmatpush1.bf16.msra.mxu0 0
        %1817 = vmatprep.subr.bf16.mxu0 0
        %1818 = vmatpush1.bf16.msra.mxu0 0
        %1819 = vmatprep.subr.bf16.mxu0 0
        %1820 = vmatpush1.bf16.msra.mxu0 0
        %1821 = vmatprep.subr.bf16.mxu0 0
        %1822 = vmatpush1.bf16.msra.mxu0 0
        %1823 = vmatprep.subr.bf16.mxu0 0
        %1824 = vmatpush1.bf16.msra.mxu0 0
        %1825 = vmatprep.subr.bf16.mxu0 0
        %1826 = vmatpush1.bf16.msra.mxu0 0
        %1827 = vmatprep.subr.bf16.mxu0 0
        %1828 = vmatpush1.bf16.msra.mxu0 0
        %1829 = vmatprep.subr.bf16.mxu0 0
        %1830 = vmatpush1.bf16.msra.mxu0 0
        %1831 = vmatprep.subr.bf16.mxu0 0
        %1832 = vmatpush1.bf16.msra.mxu0 0
        %1833 = vmatprep.subr.bf16.mxu0 0
        %1834 = vmatpush1.bf16.msra.mxu0 0
        %1835 = vmatprep.subr.bf16.mxu0 0
        %1836 = vmatpush1.bf16.msra.mxu0 0
        %1837 = vmatprep.subr.bf16.mxu0 0
        %1838 = vmatpush1.bf16.msra.mxu0 0
        %1839 = vmatprep.subr.bf16.mxu0 0
        %1840 = vmatpush1.bf16.msra.mxu0 0
        %1841 = vmatprep.mubr.bf16.mxu0 0
        %1842 = vmatmul.mubr.bf16.gmra.mrb[0].mxu0 %v1804
        %v1843 = vpop.f32.mrb[0].mxu0
        %v1844 = vadd.f32 0.0, %v1843
        %v1845 = vpop.f32.mrb[0].mxu0
        %v1846 = vpop.f32.mrb[0].mxu0
        %v1847 = vpop.f32.mrb[0].mxu0
        %1848 = vdwg.mxu0
        %v1849 = vpack.c.bf16 %v1697, %v1697
        %v1850 = vpack.c.bf16 %v1746, %v1746
        %v1851 = vpack.c.bf16 %v1795, %v1795
        %v1852 = vpack.c.bf16 %v1844, %v1844
        %v1853 = vld [vmem:[%s3] sm:$0xf]
        %v1854 = vld [vmem:[%s3 + $0x4] sm:$0xf]
        %v1855 = vld [vmem:[%s3 + $0x8] sm:$0xf]
        %v1856 = vld [vmem:[%s3 + $0xc] sm:$0xf]
        %v1857 = vld [vmem:[%s3 + $0x10] sm:$0xf]
        %v1858 = vld [vmem:[%s3 + $0x14] sm:$0xf]
        %v1859 = vld [vmem:[%s3 + $0x18] sm:$0xf]
        %v1860 = vld [vmem:[%s3 + $0x1c] sm:$0xf]
        %v1861 = vld [vmem:[%s3 + $0x20] sm:$0xf]
        %v1862 = vld [vmem:[%s3 + $0x24] sm:$0xf]
        %v1863 = vld [vmem:[%s3 + $0x28] sm:$0xf]
        %v1864 = vld [vmem:[%s3 + $0x2c] sm:$0xf]
        %v1865 = vld [vmem:[%s3 + $0x30] sm:$0xf]
        %v1866 = vld [vmem:[%s3 + $0x34] sm:$0xf]
        %v1867 = vld [vmem:[%s3 + $0x38] sm:$0xf]
        %v1868 = vld [vmem:[%s3 + $0x3c] sm:$0xf]
        %v1869 = vld [vmem:[%s3 + $0x40] sm:$0xf]
        %v1870 = vld [vmem:[%s3 + $0x44] sm:$0xf]
        %v1871 = vld [vmem:[%s3 + $0x48] sm:$0xf]
        %v1872 = vld [vmem:[%s3 + $0x4c] sm:$0xf]
        %v1873 = vld [vmem:[%s3 + $0x50] sm:$0xf]
        %v1874 = vld [vmem:[%s3 + $0x54] sm:$0xf]
        %v1875 = vld [vmem:[%s3 + $0x58] sm:$0xf]
        %v1876 = vld [vmem:[%s3 + $0x5c] sm:$0xf]
        %v1877 = vld [vmem:[%s3 + $0x60] sm:$0xf]
        %v1878 = vld [vmem:[%s3 + $0x64] sm:$0xf]
        %v1879 = vld [vmem:[%s3 + $0x68] sm:$0xf]
        %v1880 = vld [vmem:[%s3 + $0x6c] sm:$0xf]
        %v1881 = vld [vmem:[%s3 + $0x70] sm:$0xf]
        %v1882 = vld [vmem:[%s3 + $0x74] sm:$0xf]
        %v1883 = vld [vmem:[%s3 + $0x78] sm:$0xf]
        %v1884 = vld [vmem:[%s3 + $0x7c] sm:$0xf]
        %v1885 = vld [vmem:[%s3 + $0x80] sm:$0xf]
        %v1886 = vld [vmem:[%s3 + $0x84] sm:$0xf]
        %v1887 = vld [vmem:[%s3 + $0x88] sm:$0xf]
        %v1888 = vld [vmem:[%s3 + $0x8c] sm:$0xf]
        %v1889 = vld [vmem:[%s3 + $0x90] sm:$0xf]
        %v1890 = vld [vmem:[%s3 + $0x94] sm:$0xf]
        %v1891 = vld [vmem:[%s3 + $0x98] sm:$0xf]
        %v1892 = vld [vmem:[%s3 + $0x9c] sm:$0xf]
        %v1893 = vld [vmem:[%s3 + $0xa0] sm:$0xf]
        %v1894 = vld [vmem:[%s3 + $0xa4] sm:$0xf]
        %v1895 = vld [vmem:[%s3 + $0xa8] sm:$0xf]
        %v1896 = vld [vmem:[%s3 + $0xac] sm:$0xf]
        %v1897 = vld [vmem:[%s3 + $0xb0] sm:$0xf]
        %v1898 = vld [vmem:[%s3 + $0xb4] sm:$0xf]
        %v1899 = vld [vmem:[%s3 + $0xb8] sm:$0xf]
        %v1900 = vld [vmem:[%s3 + $0xbc] sm:$0xf]
        %v1901 = vld [vmem:[%s3 + $0xc0] sm:$0xf]
        %v1902 = vld [vmem:[%s3 + $0xc4] sm:$0xf]
        %v1903 = vld [vmem:[%s3 + $0xc8] sm:$0xf]
        %v1904 = vld [vmem:[%s3 + $0xcc] sm:$0xf]
        %v1905 = vld [vmem:[%s3 + $0xd0] sm:$0xf]
        %v1906 = vld [vmem:[%s3 + $0xd4] sm:$0xf]
        %v1907 = vld [vmem:[%s3 + $0xd8] sm:$0xf]
        %v1908 = vld [vmem:[%s3 + $0xdc] sm:$0xf]
        %v1909 = vld [vmem:[%s3 + $0xe0] sm:$0xf]
        %v1910 = vld [vmem:[%s3 + $0xe4] sm:$0xf]
        %v1911 = vld [vmem:[%s3 + $0xe8] sm:$0xf]
        %v1912 = vld [vmem:[%s3 + $0xec] sm:$0xf]
        %v1913 = vld [vmem:[%s3 + $0xf0] sm:$0xf]
        %v1914 = vld [vmem:[%s3 + $0xf4] sm:$0xf]
        %v1915 = vld [vmem:[%s3 + $0xf8] sm:$0xf]
        %v1916 = vld [vmem:[%s3 + $0xfc] sm:$0xf]
        %v1981 = vunpack.c.l.b16 %v1853
        %v1982 = vunpack.c.l.b16 %v1854
        %v1983 = vunpack.c.l.b16 %v1855
        %v1984 = vunpack.c.l.b16 %v1856
        %v1985 = vunpack.c.l.b16 %v1857
        %v1986 = vunpack.c.l.b16 %v1858
        %v1987 = vunpack.c.l.b16 %v1859
        %v1988 = vunpack.c.l.b16 %v1860
        %v1989 = vunpack.c.l.b16 %v1861
        %v1990 = vunpack.c.l.b16 %v1862
        %v1991 = vunpack.c.l.b16 %v1863
        %v1992 = vunpack.c.l.b16 %v1864
        %v1993 = vunpack.c.l.b16 %v1865
        %v1994 = vunpack.c.l.b16 %v1866
        %v1995 = vunpack.c.l.b16 %v1867
        %v1996 = vunpack.c.l.b16 %v1868
        %v1997 = vunpack.c.l.b16 %v1869
        %v1998 = vunpack.c.l.b16 %v1870
        %v1999 = vunpack.c.l.b16 %v1871
        %v2000 = vunpack.c.l.b16 %v1872
        %v2001 = vunpack.c.l.b16 %v1873
        %v2002 = vunpack.c.l.b16 %v1874
        %v2003 = vunpack.c.l.b16 %v1875
        %v2004 = vunpack.c.l.b16 %v1876
        %v2005 = vunpack.c.l.b16 %v1877
        %v2006 = vunpack.c.l.b16 %v1878
        %v2007 = vunpack.c.l.b16 %v1879
        %v2008 = vunpack.c.l.b16 %v1880
        %v2009 = vunpack.c.l.b16 %v1881
        %v2010 = vunpack.c.l.b16 %v1882
        %v2011 = vunpack.c.l.b16 %v1883
        %v2012 = vunpack.c.l.b16 %v1884
        %v2013 = vunpack.c.l.b16 %v1885
        %v2014 = vunpack.c.l.b16 %v1886
        %v2015 = vunpack.c.l.b16 %v1887
        %v2016 = vunpack.c.l.b16 %v1888
        %v2017 = vunpack.c.l.b16 %v1889
        %v2018 = vunpack.c.l.b16 %v1890
        %v2019 = vunpack.c.l.b16 %v1891
        %v2020 = vunpack.c.l.b16 %v1892
        %v2021 = vunpack.c.l.b16 %v1893
        %v2022 = vunpack.c.l.b16 %v1894
        %v2023 = vunpack.c.l.b16 %v1895
        %v2024 = vunpack.c.l.b16 %v1896
        %v2025 = vunpack.c.l.b16 %v1897
        %v2026 = vunpack.c.l.b16 %v1898
        %v2027 = vunpack.c.l.b16 %v1899
        %v2028 = vunpack.c.l.b16 %v1900
        %v2029 = vunpack.c.l.b16 %v1901
        %v2030 = vunpack.c.l.b16 %v1902
        %v2031 = vunpack.c.l.b16 %v1903
        %v2032 = vunpack.c.l.b16 %v1904
        %v2033 = vunpack.c.l.b16 %v1905
        %v2034 = vunpack.c.l.b16 %v1906
        %v2035 = vunpack.c.l.b16 %v1907
        %v2036 = vunpack.c.l.b16 %v1908
        %v2037 = vunpack.c.l.b16 %v1909
        %v2038 = vunpack.c.l.b16 %v1910
        %v2039 = vunpack.c.l.b16 %v1911
        %v2040 = vunpack.c.l.b16 %v1912
        %v2041 = vunpack.c.l.b16 %v1913
        %v2042 = vunpack.c.l.b16 %v1914
        %v2043 = vunpack.c.l.b16 %v1915
        %v2044 = vunpack.c.l.b16 %v1916
        %v2045 = vpack.c.b16 %v1982, %v1981
        %v2046 = vpack.c.b16 %v1984, %v1983
        %v2047 = vpack.c.b16 %v1986, %v1985
        %v2048 = vpack.c.b16 %v1988, %v1987
        %v2049 = vpack.c.b16 %v1990, %v1989
        %v2050 = vpack.c.b16 %v1992, %v1991
        %v2051 = vpack.c.b16 %v1994, %v1993
        %v2052 = vpack.c.b16 %v1996, %v1995
        %v2053 = vpack.c.b16 %v1998, %v1997
        %v2054 = vpack.c.b16 %v2000, %v1999
        %v2055 = vpack.c.b16 %v2002, %v2001
        %v2056 = vpack.c.b16 %v2004, %v2003
        %v2057 = vpack.c.b16 %v2006, %v2005
        %v2058 = vpack.c.b16 %v2008, %v2007
        %v2059 = vpack.c.b16 %v2010, %v2009
        %v2060 = vpack.c.b16 %v2012, %v2011
        %v2061 = vpack.c.b16 %v2014, %v2013
        %v2062 = vpack.c.b16 %v2016, %v2015
        %v2063 = vpack.c.b16 %v2018, %v2017
        %v2064 = vpack.c.b16 %v2020, %v2019
        %v2065 = vpack.c.b16 %v2022, %v2021
        %v2066 = vpack.c.b16 %v2024, %v2023
        %v2067 = vpack.c.b16 %v2026, %v2025
        %v2068 = vpack.c.b16 %v2028, %v2027
        %v2069 = vpack.c.b16 %v2030, %v2029
        %v2070 = vpack.c.b16 %v2032, %v2031
        %v2071 = vpack.c.b16 %v2034, %v2033
        %v2072 = vpack.c.b16 %v2036, %v2035
        %v2073 = vpack.c.b16 %v2038, %v2037
        %v2074 = vpack.c.b16 %v2040, %v2039
        %v2075 = vpack.c.b16 %v2042, %v2041
        %v2076 = vpack.c.b16 %v2044, %v2043
        %2109 = vmatprep.subr.bf16.mxu0 0
        %2110 = vmatpush1.bf16.msra.mxu0 %v2045
        %2111 = vmatprep.subr.bf16.mxu0 0
        %2112 = vmatpush1.bf16.msra.mxu0 %v2046
        %2113 = vmatprep.subr.bf16.mxu0 0
        %2114 = vmatpush1.bf16.msra.mxu0 %v2047
        %2115 = vmatprep.subr.bf16.mxu0 0
        %2116 = vmatpush1.bf16.msra.mxu0 %v2048
        %2117 = vmatprep.subr.bf16.mxu0 0
        %2118 = vmatpush1.bf16.msra.mxu0 %v2049
        %2119 = vmatprep.subr.bf16.mxu0 0
        %2120 = vmatpush1.bf16.msra.mxu0 %v2050
        %2121 = vmatprep.subr.bf16.mxu0 0
        %2122 = vmatpush1.bf16.msra.mxu0 %v2051
        %2123 = vmatprep.subr.bf16.mxu0 0
        %2124 = vmatpush1.bf16.msra.mxu0 %v2052
        %2125 = vmatprep.subr.bf16.mxu0 0
        %2126 = vmatpush1.bf16.msra.mxu0 %v2053
        %2127 = vmatprep.subr.bf16.mxu0 0
        %2128 = vmatpush1.bf16.msra.mxu0 %v2054
        %2129 = vmatprep.subr.bf16.mxu0 0
        %2130 = vmatpush1.bf16.msra.mxu0 %v2055
        %2131 = vmatprep.subr.bf16.mxu0 0
        %2132 = vmatpush1.bf16.msra.mxu0 %v2056
        %2133 = vmatprep.subr.bf16.mxu0 0
        %2134 = vmatpush1.bf16.msra.mxu0 %v2057
        %2135 = vmatprep.subr.bf16.mxu0 0
        %2136 = vmatpush1.bf16.msra.mxu0 %v2058
        %2137 = vmatprep.subr.bf16.mxu0 0
        %2138 = vmatpush1.bf16.msra.mxu0 %v2059
        %2139 = vmatprep.subr.bf16.mxu0 0
        %2140 = vmatpush1.bf16.msra.mxu0 %v2060
        %2141 = vmatprep.mubr.bf16.mxu0 %v1850
        %2142 = vmatmul.mubr.bf16.gmra.mrb[0].mxu0 %v1849
        %v2143 = vpop.f32.mrb[0].mxu0
        %v2144 = vadd.f32 0.0, %v2143
        %v2145 = vpop.f32.mrb[0].mxu0
        %v2146 = vpop.f32.mrb[0].mxu0
        %v2147 = vpop.f32.mrb[0].mxu0
        %2148 = vdwg.mxu0
        %2149 = vmatprep.subr.bf16.mxu0 0
        %2150 = vmatpush1.bf16.msra.mxu0 %v2061
        %2151 = vmatprep.subr.bf16.mxu0 0
        %2152 = vmatpush1.bf16.msra.mxu0 %v2062
        %2153 = vmatprep.subr.bf16.mxu0 0
        %2154 = vmatpush1.bf16.msra.mxu0 %v2063
        %2155 = vmatprep.subr.bf16.mxu0 0
        %2156 = vmatpush1.bf16.msra.mxu0 %v2064
        %2157 = vmatprep.subr.bf16.mxu0 0
        %2158 = vmatpush1.bf16.msra.mxu0 %v2065
        %2159 = vmatprep.subr.bf16.mxu0 0
        %2160 = vmatpush1.bf16.msra.mxu0 %v2066
        %2161 = vmatprep.subr.bf16.mxu0 0
        %2162 = vmatpush1.bf16.msra.mxu0 %v2067
        %2163 = vmatprep.subr.bf16.mxu0 0
        %2164 = vmatpush1.bf16.msra.mxu0 %v2068
        %2165 = vmatprep.subr.bf16.mxu0 0
        %2166 = vmatpush1.bf16.msra.mxu0 %v2069
        %2167 = vmatprep.subr.bf16.mxu0 0
        %2168 = vmatpush1.bf16.msra.mxu0 %v2070
        %2169 = vmatprep.subr.bf16.mxu0 0
        %2170 = vmatpush1.bf16.msra.mxu0 %v2071
        %2171 = vmatprep.subr.bf16.mxu0 0
        %2172 = vmatpush1.bf16.msra.mxu0 %v2072
        %2173 = vmatprep.subr.bf16.mxu0 0
        %2174 = vmatpush1.bf16.msra.mxu0 %v2073
        %2175 = vmatprep.subr.bf16.mxu0 0
        %2176 = vmatpush1.bf16.msra.mxu0 %v2074
        %2177 = vmatprep.subr.bf16.mxu0 0
        %2178 = vmatpush1.bf16.msra.mxu0 %v2075
        %2179 = vmatprep.subr.bf16.mxu0 0
        %2180 = vmatpush1.bf16.msra.mxu0 %v2076
        %2181 = vmatprep.mubr.bf16.mxu0 %v1852
        %2182 = vmatmul.mubr.bf16.gmra.mrb[0].mxu0 %v1851
        %v2183 = vpop.f32.mrb[0].mxu0
        %v2184 = vadd.f32 %v2144, %v2183
        %v2185 = vpop.f32.mrb[0].mxu0
        %v2186 = vpop.f32.mrb[0].mxu0
        %v2187 = vpop.f32.mrb[0].mxu0
        %2188 = vdwg.mxu0
        %2189 = vst [vmem:[%s237] sm:$0xff] %v2184
        %s2190 = sand.u32 %s134, 1
        %s2191 = scalar_lea.sflag [#allocation6], %s2190
        %s2192 = sand.u32 %s134, 1
        %s2193 = smul.addr %s2192, 8
        %s2194 = scalar_lea.vmem [#allocation5], %s2193
        %s2195 = sand.u32 %s162, 1
        %s2196 = scalar_lea.sflag [#allocation8], %s2195
        %s2197 = sand.u32 %s162, 1
        %s2198 = smul.addr %s2197, 32
        %s2199 = scalar_lea.vmem [#allocation7], %s2198
        // Predicated region
        $region41: #{tpu_custom_call.1} parent=35 // pred_check
          %p2200 = pneg %p144
        $region42: #{tpu_custom_call.1} parent=35 // pred_check_branch
          %2202 = sbr.rel (%p2200) target = $region44
        $region43: #{tpu_custom_call.1} parent=35 // pred_region
          %s2204 = ssub.s32 128, 128
          %2205 = vsyncadd %s2191, %s2204
          %s2206 = sadd.s32 %s28, %s27
          %s2207 = smul.addr %s2206, 128
          %s2208 = scalar_lea.hbm %s4, %s2207
          %s2210 = sshll.u32 %s2194, 4
          %s2211 = int_to_ptr.vmem [resolvable:$true] %s2210
          %2213 = dma.vmem_to_hbm [thread:$0]  %s2211, 128, %s2208, %s2191
        $region44: #{tpu_custom_call.1} parent=35 // pred_fallthru
          _
        // Predicated region
        $region45: #{tpu_custom_call.1} parent=35 // pred_check
          %p2214 = pneg %p172
        $region46: #{tpu_custom_call.1} parent=35 // pred_check_branch
          %2216 = sbr.rel (%p2214) target = $region48
        $region47: #{tpu_custom_call.1} parent=35 // pred_region
          %s2218 = ssub.s32 512, 512
          %2219 = vsyncadd %s2196, %s2218
          %s2220 = smul.addr %s27, 4
          %s2221 = sadd.s32 %s28, %s2220
          %s2222 = smul.addr %s2221, 128
          %s2223 = scalar_lea.hbm %s5, %s2222
          %s2224 = sshll.u32 %s2199, 4
          %s2225 = int_to_ptr.vmem [resolvable:$true] %s2224
          %2230 = dma.vmem_to_hbm [thread:$0]  %s2225, 512, %s2223, %s2196, 128, 128, 8
        $region48: #{tpu_custom_call.1} parent=35 // pred_fallthru
          _
      $region36: #{tpu_custom_call.1} parent=5 // pred_fallthru
        _
      %p2231 = scmp.le.s32.totalorder 2, %s18
      // Predicated region
      $region49: #{tpu_custom_call.1} parent=5 // pred_check
        %p2232 = pneg %p2231
      $region50: #{tpu_custom_call.1} parent=5 // pred_check_branch
        %2234 = sbr.rel (%p2232) target = $region52
      $region51: #{tpu_custom_call.1} parent=5 // pred_region
        %s2235 = ssub.s32 %s18, 2
        // Predicated region
        $region53: #{tpu_custom_call.1} parent=51 // pred_check
          %p2236 = pneg %p150
        $region54: #{tpu_custom_call.1} parent=51 // pred_check_branch
          %2238 = sbr.rel (%p2236) target = $region56
        $region55: #{tpu_custom_call.1} parent=51 // pred_region
          %s2239 = sand.u32 %s135, 1
          %s2240 = scalar_lea.sflag [#allocation6], %s2239
          %s2241 = sand.u32 %s135, 1
          %s2242 = smul.addr %s2241, 8
          %s2243 = scalar_lea.vmem [#allocation5], %s2242
          %2244 = dma.done %s2240, 128
        $region56: #{tpu_custom_call.1} parent=51 // pred_fallthru
          _
        // Predicated region
        $region57: #{tpu_custom_call.1} parent=51 // pred_check
          %p2245 = pneg %p178
        $region58: #{tpu_custom_call.1} parent=51 // pred_check_branch
          %2247 = sbr.rel (%p2245) target = $region60
        $region59: #{tpu_custom_call.1} parent=51 // pred_region
          %s2248 = sand.u32 %s163, 1
          %s2249 = scalar_lea.sflag [#allocation8], %s2248
          %s2250 = sand.u32 %s163, 1
          %s2251 = smul.addr %s2250, 32
          %s2252 = scalar_lea.vmem [#allocation7], %s2251
          %2253 = dma.done %s2249, 512
        $region60: #{tpu_custom_call.1} parent=51 // pred_fallthru
          _
      $region52: #{tpu_custom_call.1} parent=5 // pred_fallthru
        _
    $region6: #{tpu_custom_call.1} parent=1 // loop_footer
      %s22 = sadd.s32 1, %s18
    $region7: #{tpu_custom_call.1} parent=1 // loop_footer_branch
      %17 = sbr.rel target = $region3
    $region8: #{tpu_custom_call.1} parent=1 // loop_exit
      _
    %2254 = vsyncpa [#allocation6], 1
    %s2255 = scalar_lea.sflag [#allocation6], 1
    %2256 = vsyncpa %s2255, 1
    %2257 = vsyncpa [#allocation8], 1
    %s2258 = scalar_lea.sflag [#allocation8], 1
    %2259 = vsyncpa %s2258, 1

</llo_original>
